<compile_context>
chip_gen: v7x
topology: tpu7x:2x2x1
jax: 0.10.0
libtpu: 0.0.40
codegen_flags: <defaults>
</compile_context>

<pallas_src>
import functools
import numpy as np

import jax
import jax.numpy as jnp
from jax.experimental import pallas as pl
from jax.experimental.pallas import tpu as pltpu


# ----------------------------------------------------------------------------
# Fused encoder-stack + classifier kernel
# ----------------------------------------------------------------------------
def encoder_stack_kernel(x_ref, bias_ref,
                         wqkv_ref, bqkv_ref, wo_ref, bo_ref,
                         ln1_g_ref, ln1_b_ref,
                         w1_ref, b1_ref, w2_ref, b2_ref,
                         ln2_g_ref, ln2_b_ref,
                         cls_w_ref, cls_b_ref,
                         out_ref,
                         x_scr, ctx_scr,
                         *, n_heads):
    """grid = (batch_tiles, n_layers); activations resident in VMEM across layers."""
    l = pl.program_id(1)
    n_layers = pl.num_programs(1)
    Bt, S, D = x_ref.shape
    T = Bt * S
    dh = D // n_heads
    scale = 1.0 / float(np.sqrt(dh))

    # Load the embedded inputs into the resident scratch at the first layer.
    @pl.when(l == 0)
    def _():
        x_scr[...] = x_ref[...].reshape(T, D)

    x = x_scr[...]                                   # [T, D] f32
    xb = x.astype(jnp.bfloat16)

    # --- fused QKV projection (one MXU pass, N = 3D) -------------------------
    qkv = jnp.dot(xb, wqkv_ref[0], preferred_element_type=jnp.float32) + bqkv_ref[0]
    q = qkv[:, 0 * D:1 * D].reshape(Bt, S, D)
    k = qkv[:, 1 * D:2 * D].reshape(Bt, S, D)
    v = qkv[:, 2 * D:3 * D].reshape(Bt, S, D)
    bias = bias_ref[...]                             # [Bt, 1, S], -1e9 at padded keys

    # --- multi-head attention: static head unroll, batched over batch tile ---
    for h in range(n_heads):
        sl = slice(h * dh, (h + 1) * dh)
        qh = q[:, :, sl].astype(jnp.bfloat16)        # [Bt, S, dh]
        kh = k[:, :, sl].astype(jnp.bfloat16)
        vh = v[:, :, sl].astype(jnp.bfloat16)
        s = jnp.einsum('bqd,bkd->bqk', qh, kh,
                       preferred_element_type=jnp.float32) * scale + bias
        m = jnp.max(s, axis=-1, keepdims=True)
        p = jnp.exp(s - m)
        p = p * pl.reciprocal(jnp.sum(p, axis=-1, keepdims=True), approx=True)
        ctx_scr[:, :, sl] = jnp.einsum('bqk,bkd->bqd', p.astype(jnp.bfloat16), vh,
                                       preferred_element_type=jnp.float32)

    ctx = ctx_scr[...].reshape(T, D)
    attn = jnp.dot(ctx.astype(jnp.bfloat16), wo_ref[0],
                   preferred_element_type=jnp.float32) + bo_ref[0]

    # --- residual + LayerNorm 1 (f32) ----------------------------------------
    h1 = x + attn
    mu1 = jnp.mean(h1, axis=-1, keepdims=True)
    var1 = jnp.mean(jnp.square(h1 - mu1), axis=-1, keepdims=True)
    h1 = (h1 - mu1) * jax.lax.rsqrt(var1 + 1e-5) * ln1_g_ref[0] + ln1_b_ref[0]

    # --- feed-forward ---------------------------------------------------------
    f = jnp.dot(h1.astype(jnp.bfloat16), w1_ref[0],
                preferred_element_type=jnp.float32) + b1_ref[0]
    f = jnp.maximum(f, 0.0)
    f = jnp.dot(f.astype(jnp.bfloat16), w2_ref[0],
                preferred_element_type=jnp.float32) + b2_ref[0]

    # --- residual + LayerNorm 2 (f32) ----------------------------------------
    h2 = h1 + f
    mu2 = jnp.mean(h2, axis=-1, keepdims=True)
    var2 = jnp.mean(jnp.square(h2 - mu2), axis=-1, keepdims=True)
    y = (h2 - mu2) * jax.lax.rsqrt(var2 + 1e-5) * ln2_g_ref[0] + ln2_b_ref[0]

    x_scr[...] = y                                    # carry to next layer

    # --- classifier fused into the last layer step ---------------------------
    @pl.when(l == n_layers - 1)
    def _():
        pooled = jnp.max(y.reshape(Bt, S, D), axis=1)          # torch.max over seq
        logits = jnp.dot(pooled, cls_w_ref[...],
                         preferred_element_type=jnp.float32) + cls_b_ref[...]
        mlog = jnp.max(logits, axis=-1, keepdims=True)
        e = jnp.exp(logits - mlog)
        probs = e / jnp.sum(e, axis=-1, keepdims=True)         # exact (2 classes)
        out_ref[...] = probs.reshape(Bt, 1, 2).astype(out_ref.dtype)


# ----------------------------------------------------------------------------
# Wrapper
# ----------------------------------------------------------------------------
def run_qtransformer(x, bias, p, n_heads, batch_tile=1):
    """x: [B, S, D] f32 embedded inputs, bias: [B, 1, S] additive pad bias."""
    B, S, D = x.shape
    L = p["wqkv"].shape[0]
    Bt = B if batch_tile is None else batch_tile
    assert B % Bt == 0
    grid = (B // Bt, L)

    def wspec(arr):      # stacked per-layer parameter: walk the layer axis
        return pl.BlockSpec((1,) + arr.shape[1:], lambda b, l: (l, 0, 0))

    def cspec(arr):      # constant (layer-independent) parameter
        nd = arr.ndim
        return pl.BlockSpec(arr.shape, lambda b, l: (0,) * nd)

    in_specs = [
        pl.BlockSpec((Bt, S, D), lambda b, l: (b, 0, 0)),   # x (read once per tile)
        pl.BlockSpec((Bt, 1, S), lambda b, l: (b, 0, 0)),   # additive pad bias
        wspec(p["wqkv"]), wspec(p["bqkv"]),
        wspec(p["wo"]),   wspec(p["bo"]),
        wspec(p["ln1_g"]), wspec(p["ln1_b"]),
        wspec(p["w1"]),   wspec(p["b1"]),
        wspec(p["w2"]),   wspec(p["b2"]),
        wspec(p["ln2_g"]), wspec(p["ln2_b"]),
        cspec(p["cls_w"]), cspec(p["cls_b"]),
    ]
    out_spec = pl.BlockSpec((Bt, 1, 2), lambda b, l: (b, 0, 0))

    kernel = functools.partial(encoder_stack_kernel, n_heads=n_heads)
    out = pl.pallas_call(
        kernel,
        grid=grid,
        in_specs=in_specs,
        out_specs=out_spec,
        out_shape=jax.ShapeDtypeStruct((B, 1, 2), jnp.float32),
        scratch_shapes=[pltpu.VMEM((Bt * S, D), jnp.float32),   # resident activations
                        pltpu.VMEM((Bt, S, D), jnp.float32)],   # per-head context
        compiler_params=pltpu.CompilerParams(
            dimension_semantics=("parallel", "arbitrary")),
        # NOTE: for realistic D/F raise vmem_limit_bytes here and/or tile the FFN.
    )(x, bias,
      p["wqkv"], p["bqkv"], p["wo"], p["bo"], p["ln1_g"], p["ln1_b"],
      p["w1"], p["b1"], p["w2"], p["b2"], p["ln2_g"], p["ln2_b"],
      p["cls_w"], p["cls_b"])
    return out[:, 0, :]                                         # [B, 2]


# ----------------------------------------------------------------------------
# Model glue (embeddings, masks, parameter init)
# ----------------------------------------------------------------------------
def get_sinusoid_table(seq_len, d_model):
    tbl = np.zeros((seq_len, d_model), dtype=np.float64)
    for pos in range(seq_len):
        for i in range(d_model):
            angle = pos / np.power(10000, 2 * (i // 2) / d_model)
            tbl[pos, i] = np.sin(angle) if i % 2 == 0 else np.cos(angle)
    return jnp.asarray(tbl, dtype=jnp.float32)


def init_params(key, vocab_size, d_model, n_layers, d_ff):
    D, F, L = d_model, d_ff, n_layers
    keys = jax.random.split(key, 6)
    w = lambda k, shape: 0.02 * jax.random.normal(k, shape, jnp.float32)
    return {
        "embedding": w(keys[0], (vocab_size, D)),
        "cls_w": w(keys[1], (D, 2)),
        "cls_b": jnp.zeros((1, 2), jnp.float32),
        # stacked per-layer params; matmul weights stored in bf16, rest in f32
        "wqkv": w(keys[2], (L, D, 3 * D)).astype(jnp.bfloat16),
        "bqkv": jnp.zeros((L, 1, 3 * D), jnp.float32),
        "wo": w(keys[3], (L, D, D)).astype(jnp.bfloat16),
        "bo": jnp.zeros((L, 1, D), jnp.float32),
        "ln1_g": jnp.ones((L, 1, D), jnp.float32),
        "ln1_b": jnp.zeros((L, 1, D), jnp.float32),
        "w1": w(keys[4], (L, D, F)).astype(jnp.bfloat16),
        "b1": jnp.zeros((L, 1, F), jnp.float32),
        "w2": w(keys[5], (L, F, D)).astype(jnp.bfloat16),
        "b2": jnp.zeros((L, 1, D), jnp.float32),
        "ln2_g": jnp.ones((L, 1, D), jnp.float32),
        "ln2_b": jnp.zeros((L, 1, D), jnp.float32),
    }


def qtransformer_forward(inputs, params, sinusoid_table, n_heads, pad_id=0, batch_tile=1):
    B, S = inputs.shape
    # positions = arange(S)+1, zeroed where token == pad_id
    positions = jnp.broadcast_to(jnp.arange(S, dtype=inputs.dtype)[None, :] + 1, (B, S))
    positions = jnp.where(inputs == pad_id, jnp.zeros_like(positions), positions)

    # token embedding + frozen sinusoid positional embedding (XLA gather)
    x = (params["embedding"][inputs] + sinusoid_table[positions]).astype(jnp.float32)

    # tiny additive key-pad bias [B, 1, S]; the [S, S] expansion happens in-kernel
    bias = jnp.where(inputs == pad_id, jnp.float32(-1e9), jnp.float32(0.0))[:, None, :]

    return run_qtransformer(x, bias, params, n_heads, batch_tile)   # [B, 2] softmax probs


# ----------------------------------------------------------------------------
if __name__ == "__main__":
    # small config consistent with the module's forward
    VOCAB, MAX_SEQ, D_MODEL, N_LAYERS, N_HEADS, D_FF, PAD_ID = 64, 16, 32, 2, 4, 64, 0
    B, S = 2, 8

    key = jax.random.PRNGKey(0)
    k_tok, k_par = jax.random.split(key)

    inputs = jax.random.randint(k_tok, (B, S), 1, VOCAB, dtype=jnp.int32)
    inputs = inputs.at[1, 6:].set(PAD_ID)   # exercise the padding-mask path

    params = init_params(k_par, VOCAB, D_MODEL, N_LAYERS, D_FF)
    sinusoid_table = get_sinusoid_table(MAX_SEQ + 1, D_MODEL)

    # batch_tile=1 -> grid (B, L) with a >=2-extent "parallel" batch axis (v7x megacore);
    # for larger B pick the largest batch_tile that fits VMEM.
    out = qtransformer_forward(inputs, params, sinusoid_table, N_HEADS, PAD_ID, batch_tile=1)
    out = jax.block_until_ready(out)

    assert out.shape == (B, 2)
    assert bool(jnp.all(jnp.isfinite(out)))
    assert bool(jnp.allclose(jnp.sum(out, axis=-1), 1.0, atol=1e-4))
    print("KERNEL_OK")
</pallas_src>

<mosaic_0001>
module attributes {stable_mosaic.version = 11 : i64} {
  func.func @encoder_stack_kernel(%arg0: i32, %arg1: i32, %arg2: memref<1x8x32xf32, #tpu.memory_space<vmem>>, %arg3: memref<1x1x8xf32, #tpu.memory_space<vmem>>, %arg4: memref<1x32x96xbf16, #tpu.memory_space<vmem>>, %arg5: memref<1x1x96xf32, #tpu.memory_space<vmem>>, %arg6: memref<1x32x32xbf16, #tpu.memory_space<vmem>>, %arg7: memref<1x1x32xf32, #tpu.memory_space<vmem>>, %arg8: memref<1x1x32xf32, #tpu.memory_space<vmem>>, %arg9: memref<1x1x32xf32, #tpu.memory_space<vmem>>, %arg10: memref<1x32x64xbf16, #tpu.memory_space<vmem>>, %arg11: memref<1x1x64xf32, #tpu.memory_space<vmem>>, %arg12: memref<1x64x32xbf16, #tpu.memory_space<vmem>>, %arg13: memref<1x1x32xf32, #tpu.memory_space<vmem>>, %arg14: memref<1x1x32xf32, #tpu.memory_space<vmem>>, %arg15: memref<1x1x32xf32, #tpu.memory_space<vmem>>, %arg16: memref<32x2xf32, #tpu.memory_space<vmem>>, %arg17: memref<1x2xf32, #tpu.memory_space<vmem>>, %arg18: memref<1x1x2xf32, #tpu.memory_space<vmem>>, %arg19: memref<8x32xf32, #tpu.memory_space<vmem>>, %arg20: memref<1x8x32xf32, #tpu.memory_space<vmem>>) attributes {dimension_semantics = [#tpu.dimension_semantics<parallel>, #tpu.dimension_semantics<arbitrary>], iteration_bounds = array<i64: 2, 2>, scalar_prefetch = 0 : i64, scratch_operands = 2 : i64, tpu.core_type = #tpu.core_type<tc>, window_params = [{transform_indices = @transform_0, window_bounds = array<i64: 1, 8, 32>}, {transform_indices = @transform_1, window_bounds = array<i64: 1, 1, 8>}, {transform_indices = @transform_2, window_bounds = array<i64: 1, 32, 96>}, {transform_indices = @transform_3, window_bounds = array<i64: 1, 1, 96>}, {transform_indices = @transform_4, window_bounds = array<i64: 1, 32, 32>}, {transform_indices = @transform_5, window_bounds = array<i64: 1, 1, 32>}, {transform_indices = @transform_6, window_bounds = array<i64: 1, 1, 32>}, {transform_indices = @transform_7, window_bounds = array<i64: 1, 1, 32>}, {transform_indices = @transform_8, window_bounds = array<i64: 1, 32, 64>}, {transform_indices = @transform_9, window_bounds = array<i64: 1, 1, 64>}, {transform_indices = @transform_10, window_bounds = array<i64: 1, 64, 32>}, {transform_indices = @transform_11, window_bounds = array<i64: 1, 1, 32>}, {transform_indices = @transform_12, window_bounds = array<i64: 1, 1, 32>}, {transform_indices = @transform_13, window_bounds = array<i64: 1, 1, 32>}, {pipeline_mode = #tpu.pipeline_mode<synchronous>, transform_indices = @transform_14, window_bounds = array<i64: 32, 2>}, {pipeline_mode = #tpu.pipeline_mode<synchronous>, transform_indices = @transform_15, window_bounds = array<i64: 1, 2>}, {transform_indices = @transform_16, window_bounds = array<i64: 1, 1, 2>}]} {
    %c0_i32 = arith.constant 0 : i32
    %0 = arith.cmpi eq, %arg1, %c0_i32 : i32
    %1 = arith.extui %0 : i1 to i32
    %c0_i32_0 = arith.constant 0 : i32
    %2 = arith.cmpi ne, %1, %c0_i32_0 : i32
    scf.if %2 {
      %c0_90 = arith.constant 0 : index
      %c0_91 = arith.constant 0 : index
      %c0_92 = arith.constant 0 : index
      %201 = vector.load %arg2[%c0_90, %c0_91, %c0_92] : memref<1x8x32xf32, #tpu.memory_space<vmem>>, vector<1x8x32xf32>
      %202 = vector.shape_cast %201 : vector<1x8x32xf32> to vector<8x32xf32>
      %c0_93 = arith.constant 0 : index
      %c0_94 = arith.constant 0 : index
      %203 = vector.load %arg19[%c0_93, %c0_94] : memref<8x32xf32, #tpu.memory_space<vmem>>, vector<8x32xf32>
      tpu.vector_store %arg19[%c0_93, %c0_94], %202 {strides = array<i32>} : memref<8x32xf32, #tpu.memory_space<vmem>>, vector<8x32xf32>,
    } else {
    }
    %c0 = arith.constant 0 : index
    %c0_1 = arith.constant 0 : index
    %3 = vector.load %arg19[%c0, %c0_1] : memref<8x32xf32, #tpu.memory_space<vmem>>, vector<8x32xf32>
    %4 = arith.truncf %3 : vector<8x32xf32> to vector<8x32xbf16>
    %c0_2 = arith.constant 0 : index
    %c0_3 = arith.constant 0 : index
    %c0_4 = arith.constant 0 : index
    %5 = vector.load %arg4[%c0_2, %c0_3, %c0_4] : memref<1x32x96xbf16, #tpu.memory_space<vmem>>, vector<1x32x96xbf16>
    %6 = vector.shape_cast %5 : vector<1x32x96xbf16> to vector<32x96xbf16>
    %cst = arith.constant dense<0.000000e+00> : vector<8x96xf32>
    %7 = tpu.matmul %4, %6, %cst {dimension_numbers = #tpu.dot_dimension_numbers<[1], [0], [0], [1], [0, 0, 1, 1], [], []>} : vector<8x32xbf16>, vector<32x96xbf16>, vector<8x96xf32> -> vector<8x96xf32>
    %c0_5 = arith.constant 0 : index
    %c0_6 = arith.constant 0 : index
    %c0_7 = arith.constant 0 : index
    %8 = vector.load %arg5[%c0_5, %c0_6, %c0_7] : memref<1x1x96xf32, #tpu.memory_space<vmem>>, vector<1x1x96xf32>
    %9 = vector.shape_cast %8 : vector<1x1x96xf32> to vector<1x96xf32>
    %10 = vector.broadcast %9 : vector<1x96xf32> to vector<8x96xf32>
    %11 = arith.addf %7, %10 : vector<8x96xf32>
    %12 = vector.extract_strided_slice %11 {offsets = [0, 0], sizes = [8, 32], strides = [1, 1]} : vector<8x96xf32> to vector<8x32xf32>
    %13 = vector.shape_cast %12 : vector<8x32xf32> to vector<1x8x32xf32>
    %14 = vector.extract_strided_slice %11 {offsets = [0, 32], sizes = [8, 32], strides = [1, 1]} : vector<8x96xf32> to vector<8x32xf32>
    %15 = vector.shape_cast %14 : vector<8x32xf32> to vector<1x8x32xf32>
    %16 = vector.extract_strided_slice %11 {offsets = [0, 64], sizes = [8, 32], strides = [1, 1]} : vector<8x96xf32> to vector<8x32xf32>
    %17 = vector.shape_cast %16 : vector<8x32xf32> to vector<1x8x32xf32>
    %c0_8 = arith.constant 0 : index
    %c0_9 = arith.constant 0 : index
    %c0_10 = arith.constant 0 : index
    %18 = vector.load %arg3[%c0_8, %c0_9, %c0_10] : memref<1x1x8xf32, #tpu.memory_space<vmem>>, vector<1x1x8xf32>
    %19 = vector.extract_strided_slice %13 {offsets = [0, 0, 0], sizes = [1, 8, 8], strides = [1, 1, 1]} : vector<1x8x32xf32> to vector<1x8x8xf32>
    %20 = arith.truncf %19 : vector<1x8x8xf32> to vector<1x8x8xbf16>
    %21 = vector.extract_strided_slice %15 {offsets = [0, 0, 0], sizes = [1, 8, 8], strides = [1, 1, 1]} : vector<1x8x32xf32> to vector<1x8x8xf32>
    %22 = arith.truncf %21 : vector<1x8x8xf32> to vector<1x8x8xbf16>
    %23 = vector.extract_strided_slice %17 {offsets = [0, 0, 0], sizes = [1, 8, 8], strides = [1, 1, 1]} : vector<1x8x32xf32> to vector<1x8x8xf32>
    %24 = arith.truncf %23 : vector<1x8x8xf32> to vector<1x8x8xbf16>
    "tpu.trace_start"() <{level = 10 : i32, message = "bqd,bkd->bqk"}> : () -> ()
    %cst_11 = arith.constant dense<0.000000e+00> : vector<1x8x8xf32>
    %25 = tpu.matmul %20, %22, %cst_11 {dimension_numbers = #tpu.dot_dimension_numbers<[2], [2], [1], [1], [0, 0, 0, 1, 1, 1], [0], [0]>} : vector<1x8x8xbf16>, vector<1x8x8xbf16>, vector<1x8x8xf32> -> vector<1x8x8xf32>
    "tpu.trace_stop"() : () -> ()
    %cst_12 = arith.constant 0.353553385 : f32
    %26 = vector.broadcast %cst_12 : f32 to vector<1x8x8xf32>
    %27 = arith.mulf %25, %26 : vector<1x8x8xf32>
    %28 = vector.broadcast %18 : vector<1x1x8xf32> to vector<1x8x8xf32>
    %29 = arith.addf %27, %28 : vector<1x8x8xf32>
    %cst_13 = arith.constant dense<0xFF800000> : vector<1x8xf32>
    %30 = vector.multi_reduction <maximumf>, %29, %cst_13 [2] : vector<1x8x8xf32> to vector<1x8xf32>
    %31 = vector.shape_cast %30 : vector<1x8xf32> to vector<1x8x1xf32>
    %32 = vector.broadcast %31 : vector<1x8x1xf32> to vector<1x8x8xf32>
    %33 = arith.subf %29, %32 : vector<1x8x8xf32>
    %34 = math.exp %33 : vector<1x8x8xf32>
    %cst_14 = arith.constant dense<0.000000e+00> : vector<1x8xf32>
    %35 = vector.multi_reduction <add>, %34, %cst_14 [2] : vector<1x8x8xf32> to vector<1x8xf32>
    %36 = vector.shape_cast %35 : vector<1x8xf32> to vector<1x8x1xf32>
    %37 = tpu.reciprocal %36 {approx = true} : vector<1x8x1xf32> -> vector<1x8x1xf32>
    %38 = vector.broadcast %37 : vector<1x8x1xf32> to vector<1x8x8xf32>
    %39 = arith.mulf %34, %38 : vector<1x8x8xf32>
    %40 = arith.truncf %39 : vector<1x8x8xf32> to vector<1x8x8xbf16>
    "tpu.trace_start"() <{level = 10 : i32, message = "bqk,bkd->bqd"}> : () -> ()
    %cst_15 = arith.constant dense<0.000000e+00> : vector<1x8x8xf32>
    %41 = tpu.matmul %40, %24, %cst_15 {dimension_numbers = #tpu.dot_dimension_numbers<[2], [1], [1], [2], [0, 0, 0, 1, 1, 2], [0], [0]>} : vector<1x8x8xbf16>, vector<1x8x8xbf16>, vector<1x8x8xf32> -> vector<1x8x8xf32>
    "tpu.trace_stop"() : () -> ()
    %c0_16 = arith.constant 0 : index
    %c0_17 = arith.constant 0 : index
    %c0_18 = arith.constant 0 : index
    %42 = vector.load %arg20[%c0_16, %c0_17, %c0_18] : memref<1x8x32xf32, #tpu.memory_space<vmem>>, vector<1x8x8xf32>
    tpu.vector_store %arg20[%c0_16, %c0_17, %c0_18], %41 {strides = array<i32>} : memref<1x8x32xf32, #tpu.memory_space<vmem>>, vector<1x8x8xf32>,
    %43 = vector.extract_strided_slice %13 {offsets = [0, 0, 8], sizes = [1, 8, 8], strides = [1, 1, 1]} : vector<1x8x32xf32> to vector<1x8x8xf32>
    %44 = arith.truncf %43 : vector<1x8x8xf32> to vector<1x8x8xbf16>
    %45 = vector.extract_strided_slice %15 {offsets = [0, 0, 8], sizes = [1, 8, 8], strides = [1, 1, 1]} : vector<1x8x32xf32> to vector<1x8x8xf32>
    %46 = arith.truncf %45 : vector<1x8x8xf32> to vector<1x8x8xbf16>
    %47 = vector.extract_strided_slice %17 {offsets = [0, 0, 8], sizes = [1, 8, 8], strides = [1, 1, 1]} : vector<1x8x32xf32> to vector<1x8x8xf32>
    %48 = arith.truncf %47 : vector<1x8x8xf32> to vector<1x8x8xbf16>
    "tpu.trace_start"() <{level = 10 : i32, message = "bqd,bkd->bqk"}> : () -> ()
    %cst_19 = arith.constant dense<0.000000e+00> : vector<1x8x8xf32>
    %49 = tpu.matmul %44, %46, %cst_19 {dimension_numbers = #tpu.dot_dimension_numbers<[2], [2], [1], [1], [0, 0, 0, 1, 1, 1], [0], [0]>} : vector<1x8x8xbf16>, vector<1x8x8xbf16>, vector<1x8x8xf32> -> vector<1x8x8xf32>
    "tpu.trace_stop"() : () -> ()
    %cst_20 = arith.constant 0.353553385 : f32
    %50 = vector.broadcast %cst_20 : f32 to vector<1x8x8xf32>
    %51 = arith.mulf %49, %50 : vector<1x8x8xf32>
    %52 = vector.broadcast %18 : vector<1x1x8xf32> to vector<1x8x8xf32>
    %53 = arith.addf %51, %52 : vector<1x8x8xf32>
    %cst_21 = arith.constant dense<0xFF800000> : vector<1x8xf32>
    %54 = vector.multi_reduction <maximumf>, %53, %cst_21 [2] : vector<1x8x8xf32> to vector<1x8xf32>
    %55 = vector.shape_cast %54 : vector<1x8xf32> to vector<1x8x1xf32>
    %56 = vector.broadcast %55 : vector<1x8x1xf32> to vector<1x8x8xf32>
    %57 = arith.subf %53, %56 : vector<1x8x8xf32>
    %58 = math.exp %57 : vector<1x8x8xf32>
    %cst_22 = arith.constant dense<0.000000e+00> : vector<1x8xf32>
    %59 = vector.multi_reduction <add>, %58, %cst_22 [2] : vector<1x8x8xf32> to vector<1x8xf32>
    %60 = vector.shape_cast %59 : vector<1x8xf32> to vector<1x8x1xf32>
    %61 = tpu.reciprocal %60 {approx = true} : vector<1x8x1xf32> -> vector<1x8x1xf32>
    %62 = vector.broadcast %61 : vector<1x8x1xf32> to vector<1x8x8xf32>
    %63 = arith.mulf %58, %62 : vector<1x8x8xf32>
    %64 = arith.truncf %63 : vector<1x8x8xf32> to vector<1x8x8xbf16>
    "tpu.trace_start"() <{level = 10 : i32, message = "bqk,bkd->bqd"}> : () -> ()
    %cst_23 = arith.constant dense<0.000000e+00> : vector<1x8x8xf32>
    %65 = tpu.matmul %64, %48, %cst_23 {dimension_numbers = #tpu.dot_dimension_numbers<[2], [1], [1], [2], [0, 0, 0, 1, 1, 2], [0], [0]>} : vector<1x8x8xbf16>, vector<1x8x8xbf16>, vector<1x8x8xf32> -> vector<1x8x8xf32>
    "tpu.trace_stop"() : () -> ()
    %c0_24 = arith.constant 0 : index
    %c0_25 = arith.constant 0 : index
    %c8 = arith.constant 8 : index
    %66 = vector.load %arg20[%c0_24, %c0_25, %c8] : memref<1x8x32xf32, #tpu.memory_space<vmem>>, vector<1x8x8xf32>
    tpu.vector_store %arg20[%c0_24, %c0_25, %c8], %65 {strides = array<i32>} : memref<1x8x32xf32, #tpu.memory_space<vmem>>, vector<1x8x8xf32>,
    %67 = vector.extract_strided_slice %13 {offsets = [0, 0, 16], sizes = [1, 8, 8], strides = [1, 1, 1]} : vector<1x8x32xf32> to vector<1x8x8xf32>
    %68 = arith.truncf %67 : vector<1x8x8xf32> to vector<1x8x8xbf16>
    %69 = vector.extract_strided_slice %15 {offsets = [0, 0, 16], sizes = [1, 8, 8], strides = [1, 1, 1]} : vector<1x8x32xf32> to vector<1x8x8xf32>
    %70 = arith.truncf %69 : vector<1x8x8xf32> to vector<1x8x8xbf16>
    %71 = vector.extract_strided_slice %17 {offsets = [0, 0, 16], sizes = [1, 8, 8], strides = [1, 1, 1]} : vector<1x8x32xf32> to vector<1x8x8xf32>
    %72 = arith.truncf %71 : vector<1x8x8xf32> to vector<1x8x8xbf16>
    "tpu.trace_start"() <{level = 10 : i32, message = "bqd,bkd->bqk"}> : () -> ()
    %cst_26 = arith.constant dense<0.000000e+00> : vector<1x8x8xf32>
    %73 = tpu.matmul %68, %70, %cst_26 {dimension_numbers = #tpu.dot_dimension_numbers<[2], [2], [1], [1], [0, 0, 0, 1, 1, 1], [0], [0]>} : vector<1x8x8xbf16>, vector<1x8x8xbf16>, vector<1x8x8xf32> -> vector<1x8x8xf32>
    "tpu.trace_stop"() : () -> ()
    %cst_27 = arith.constant 0.353553385 : f32
    %74 = vector.broadcast %cst_27 : f32 to vector<1x8x8xf32>
    %75 = arith.mulf %73, %74 : vector<1x8x8xf32>
    %76 = vector.broadcast %18 : vector<1x1x8xf32> to vector<1x8x8xf32>
    %77 = arith.addf %75, %76 : vector<1x8x8xf32>
    %cst_28 = arith.constant dense<0xFF800000> : vector<1x8xf32>
    %78 = vector.multi_reduction <maximumf>, %77, %cst_28 [2] : vector<1x8x8xf32> to vector<1x8xf32>
    %79 = vector.shape_cast %78 : vector<1x8xf32> to vector<1x8x1xf32>
    %80 = vector.broadcast %79 : vector<1x8x1xf32> to vector<1x8x8xf32>
    %81 = arith.subf %77, %80 : vector<1x8x8xf32>
    %82 = math.exp %81 : vector<1x8x8xf32>
    %cst_29 = arith.constant dense<0.000000e+00> : vector<1x8xf32>
    %83 = vector.multi_reduction <add>, %82, %cst_29 [2] : vector<1x8x8xf32> to vector<1x8xf32>
    %84 = vector.shape_cast %83 : vector<1x8xf32> to vector<1x8x1xf32>
    %85 = tpu.reciprocal %84 {approx = true} : vector<1x8x1xf32> -> vector<1x8x1xf32>
    %86 = vector.broadcast %85 : vector<1x8x1xf32> to vector<1x8x8xf32>
    %87 = arith.mulf %82, %86 : vector<1x8x8xf32>
    %88 = arith.truncf %87 : vector<1x8x8xf32> to vector<1x8x8xbf16>
    "tpu.trace_start"() <{level = 10 : i32, message = "bqk,bkd->bqd"}> : () -> ()
    %cst_30 = arith.constant dense<0.000000e+00> : vector<1x8x8xf32>
    %89 = tpu.matmul %88, %72, %cst_30 {dimension_numbers = #tpu.dot_dimension_numbers<[2], [1], [1], [2], [0, 0, 0, 1, 1, 2], [0], [0]>} : vector<1x8x8xbf16>, vector<1x8x8xbf16>, vector<1x8x8xf32> -> vector<1x8x8xf32>
    "tpu.trace_stop"() : () -> ()
    %c0_31 = arith.constant 0 : index
    %c0_32 = arith.constant 0 : index
    %c16 = arith.constant 16 : index
    %90 = vector.load %arg20[%c0_31, %c0_32, %c16] : memref<1x8x32xf32, #tpu.memory_space<vmem>>, vector<1x8x8xf32>
    tpu.vector_store %arg20[%c0_31, %c0_32, %c16], %89 {strides = array<i32>} : memref<1x8x32xf32, #tpu.memory_space<vmem>>, vector<1x8x8xf32>,
    %91 = vector.extract_strided_slice %13 {offsets = [0, 0, 24], sizes = [1, 8, 8], strides = [1, 1, 1]} : vector<1x8x32xf32> to vector<1x8x8xf32>
    %92 = arith.truncf %91 : vector<1x8x8xf32> to vector<1x8x8xbf16>
    %93 = vector.extract_strided_slice %15 {offsets = [0, 0, 24], sizes = [1, 8, 8], strides = [1, 1, 1]} : vector<1x8x32xf32> to vector<1x8x8xf32>
    %94 = arith.truncf %93 : vector<1x8x8xf32> to vector<1x8x8xbf16>
    %95 = vector.extract_strided_slice %17 {offsets = [0, 0, 24], sizes = [1, 8, 8], strides = [1, 1, 1]} : vector<1x8x32xf32> to vector<1x8x8xf32>
    %96 = arith.truncf %95 : vector<1x8x8xf32> to vector<1x8x8xbf16>
    "tpu.trace_start"() <{level = 10 : i32, message = "bqd,bkd->bqk"}> : () -> ()
    %cst_33 = arith.constant dense<0.000000e+00> : vector<1x8x8xf32>
    %97 = tpu.matmul %92, %94, %cst_33 {dimension_numbers = #tpu.dot_dimension_numbers<[2], [2], [1], [1], [0, 0, 0, 1, 1, 1], [0], [0]>} : vector<1x8x8xbf16>, vector<1x8x8xbf16>, vector<1x8x8xf32> -> vector<1x8x8xf32>
    "tpu.trace_stop"() : () -> ()
    %cst_34 = arith.constant 0.353553385 : f32
    %98 = vector.broadcast %cst_34 : f32 to vector<1x8x8xf32>
    %99 = arith.mulf %97, %98 : vector<1x8x8xf32>
    %100 = vector.broadcast %18 : vector<1x1x8xf32> to vector<1x8x8xf32>
    %101 = arith.addf %99, %100 : vector<1x8x8xf32>
    %cst_35 = arith.constant dense<0xFF800000> : vector<1x8xf32>
    %102 = vector.multi_reduction <maximumf>, %101, %cst_35 [2] : vector<1x8x8xf32> to vector<1x8xf32>
    %103 = vector.shape_cast %102 : vector<1x8xf32> to vector<1x8x1xf32>
    %104 = vector.broadcast %103 : vector<1x8x1xf32> to vector<1x8x8xf32>
    %105 = arith.subf %101, %104 : vector<1x8x8xf32>
    %106 = math.exp %105 : vector<1x8x8xf32>
    %cst_36 = arith.constant dense<0.000000e+00> : vector<1x8xf32>
    %107 = vector.multi_reduction <add>, %106, %cst_36 [2] : vector<1x8x8xf32> to vector<1x8xf32>
    %108 = vector.shape_cast %107 : vector<1x8xf32> to vector<1x8x1xf32>
    %109 = tpu.reciprocal %108 {approx = true} : vector<1x8x1xf32> -> vector<1x8x1xf32>
    %110 = vector.broadcast %109 : vector<1x8x1xf32> to vector<1x8x8xf32>
    %111 = arith.mulf %106, %110 : vector<1x8x8xf32>
    %112 = arith.truncf %111 : vector<1x8x8xf32> to vector<1x8x8xbf16>
    "tpu.trace_start"() <{level = 10 : i32, message = "bqk,bkd->bqd"}> : () -> ()
    %cst_37 = arith.constant dense<0.000000e+00> : vector<1x8x8xf32>
    %113 = tpu.matmul %112, %96, %cst_37 {dimension_numbers = #tpu.dot_dimension_numbers<[2], [1], [1], [2], [0, 0, 0, 1, 1, 2], [0], [0]>} : vector<1x8x8xbf16>, vector<1x8x8xbf16>, vector<1x8x8xf32> -> vector<1x8x8xf32>
    "tpu.trace_stop"() : () -> ()
    %c0_38 = arith.constant 0 : index
    %c0_39 = arith.constant 0 : index
    %c24 = arith.constant 24 : index
    %114 = vector.load %arg20[%c0_38, %c0_39, %c24] : memref<1x8x32xf32, #tpu.memory_space<vmem>>, vector<1x8x8xf32>
    tpu.vector_store %arg20[%c0_38, %c0_39, %c24], %113 {strides = array<i32>} : memref<1x8x32xf32, #tpu.memory_space<vmem>>, vector<1x8x8xf32>,
    %c0_40 = arith.constant 0 : index
    %c0_41 = arith.constant 0 : index
    %c0_42 = arith.constant 0 : index
    %115 = vector.load %arg20[%c0_40, %c0_41, %c0_42] : memref<1x8x32xf32, #tpu.memory_space<vmem>>, vector<1x8x32xf32>
    %116 = vector.shape_cast %115 : vector<1x8x32xf32> to vector<8x32xf32>
    %117 = arith.truncf %116 : vector<8x32xf32> to vector<8x32xbf16>
    %c0_43 = arith.constant 0 : index
    %c0_44 = arith.constant 0 : index
    %c0_45 = arith.constant 0 : index
    %118 = vector.load %arg6[%c0_43, %c0_44, %c0_45] : memref<1x32x32xbf16, #tpu.memory_space<vmem>>, vector<1x32x32xbf16>
    %119 = vector.shape_cast %118 : vector<1x32x32xbf16> to vector<32x32xbf16>
    %cst_46 = arith.constant dense<0.000000e+00> : vector<8x32xf32>
    %120 = tpu.matmul %117, %119, %cst_46 {dimension_numbers = #tpu.dot_dimension_numbers<[1], [0], [0], [1], [0, 0, 1, 1], [], []>} : vector<8x32xbf16>, vector<32x32xbf16>, vector<8x32xf32> -> vector<8x32xf32>
    %c0_47 = arith.constant 0 : index
    %c0_48 = arith.constant 0 : index
    %c0_49 = arith.constant 0 : index
    %121 = vector.load %arg7[%c0_47, %c0_48, %c0_49] : memref<1x1x32xf32, #tpu.memory_space<vmem>>, vector<1x1x32xf32>
    %122 = vector.shape_cast %121 : vector<1x1x32xf32> to vector<1x32xf32>
    %123 = vector.broadcast %122 : vector<1x32xf32> to vector<8x32xf32>
    %124 = arith.addf %120, %123 : vector<8x32xf32>
    %125 = arith.addf %3, %124 : vector<8x32xf32>
    %cst_50 = arith.constant dense<0.000000e+00> : vector<8xf32>
    %126 = vector.multi_reduction <add>, %125, %cst_50 [1] : vector<8x32xf32> to vector<8xf32>
    %127 = vector.shape_cast %126 : vector<8xf32> to vector<8x1xf32>
    %cst_51 = arith.constant 3.200000e+01 : f32
    %128 = vector.broadcast %cst_51 : f32 to vector<8x1xf32>
    %129 = arith.divf %127, %128 : vector<8x1xf32>
    %130 = vector.broadcast %129 : vector<8x1xf32> to vector<8x32xf32>
    %131 = arith.subf %125, %130 : vector<8x32xf32>
    %132 = arith.mulf %131, %131 : vector<8x32xf32>
    %cst_52 = arith.constant dense<0.000000e+00> : vector<8xf32>
    %133 = vector.multi_reduction <add>, %132, %cst_52 [1] : vector<8x32xf32> to vector<8xf32>
    %134 = vector.shape_cast %133 : vector<8xf32> to vector<8x1xf32>
    %cst_53 = arith.constant 3.200000e+01 : f32
    %135 = vector.broadcast %cst_53 : f32 to vector<8x1xf32>
    %136 = arith.divf %134, %135 : vector<8x1xf32>
    %137 = vector.broadcast %129 : vector<8x1xf32> to vector<8x32xf32>
    %138 = arith.subf %125, %137 : vector<8x32xf32>
    %cst_54 = arith.constant 9.99999974E-6 : f32
    %139 = vector.broadcast %cst_54 : f32 to vector<8x1xf32>
    %140 = arith.addf %136, %139 : vector<8x1xf32>
    %141 = math.rsqrt %140 : vector<8x1xf32>
    %142 = vector.broadcast %141 : vector<8x1xf32> to vector<8x32xf32>
    %143 = arith.mulf %138, %142 : vector<8x32xf32>
    %c0_55 = arith.constant 0 : index
    %c0_56 = arith.constant 0 : index
    %c0_57 = arith.constant 0 : index
    %144 = vector.load %arg8[%c0_55, %c0_56, %c0_57] : memref<1x1x32xf32, #tpu.memory_space<vmem>>, vector<1x1x32xf32>
    %145 = vector.shape_cast %144 : vector<1x1x32xf32> to vector<1x32xf32>
    %146 = vector.broadcast %145 : vector<1x32xf32> to vector<8x32xf32>
    %147 = arith.mulf %143, %146 : vector<8x32xf32>
    %c0_58 = arith.constant 0 : index
    %c0_59 = arith.constant 0 : index
    %c0_60 = arith.constant 0 : index
    %148 = vector.load %arg9[%c0_58, %c0_59, %c0_60] : memref<1x1x32xf32, #tpu.memory_space<vmem>>, vector<1x1x32xf32>
    %149 = vector.shape_cast %148 : vector<1x1x32xf32> to vector<1x32xf32>
    %150 = vector.broadcast %149 : vector<1x32xf32> to vector<8x32xf32>
    %151 = arith.addf %147, %150 : vector<8x32xf32>
    %152 = arith.truncf %151 : vector<8x32xf32> to vector<8x32xbf16>
    %c0_61 = arith.constant 0 : index
    %c0_62 = arith.constant 0 : index
    %c0_63 = arith.constant 0 : index
    %153 = vector.load %arg10[%c0_61, %c0_62, %c0_63] : memref<1x32x64xbf16, #tpu.memory_space<vmem>>, vector<1x32x64xbf16>
    %154 = vector.shape_cast %153 : vector<1x32x64xbf16> to vector<32x64xbf16>
    %cst_64 = arith.constant dense<0.000000e+00> : vector<8x64xf32>
    %155 = tpu.matmul %152, %154, %cst_64 {dimension_numbers = #tpu.dot_dimension_numbers<[1], [0], [0], [1], [0, 0, 1, 1], [], []>} : vector<8x32xbf16>, vector<32x64xbf16>, vector<8x64xf32> -> vector<8x64xf32>
    %c0_65 = arith.constant 0 : index
    %c0_66 = arith.constant 0 : index
    %c0_67 = arith.constant 0 : index
    %156 = vector.load %arg11[%c0_65, %c0_66, %c0_67] : memref<1x1x64xf32, #tpu.memory_space<vmem>>, vector<1x1x64xf32>
    %157 = vector.shape_cast %156 : vector<1x1x64xf32> to vector<1x64xf32>
    %158 = vector.broadcast %157 : vector<1x64xf32> to vector<8x64xf32>
    %159 = arith.addf %155, %158 : vector<8x64xf32>
    %cst_68 = arith.constant 0.000000e+00 : f32
    %160 = vector.broadcast %cst_68 : f32 to vector<8x64xf32>
    %161 = arith.maximumf %159, %160 : vector<8x64xf32>
    %162 = arith.truncf %161 : vector<8x64xf32> to vector<8x64xbf16>
    %c0_69 = arith.constant 0 : index
    %c0_70 = arith.constant 0 : index
    %c0_71 = arith.constant 0 : index
    %163 = vector.load %arg12[%c0_69, %c0_70, %c0_71] : memref<1x64x32xbf16, #tpu.memory_space<vmem>>, vector<1x64x32xbf16>
    %164 = vector.shape_cast %163 : vector<1x64x32xbf16> to vector<64x32xbf16>
    %cst_72 = arith.constant dense<0.000000e+00> : vector<8x32xf32>
    %165 = tpu.matmul %162, %164, %cst_72 {dimension_numbers = #tpu.dot_dimension_numbers<[1], [0], [0], [1], [0, 0, 1, 1], [], []>} : vector<8x64xbf16>, vector<64x32xbf16>, vector<8x32xf32> -> vector<8x32xf32>
    %c0_73 = arith.constant 0 : index
    %c0_74 = arith.constant 0 : index
    %c0_75 = arith.constant 0 : index
    %166 = vector.load %arg13[%c0_73, %c0_74, %c0_75] : memref<1x1x32xf32, #tpu.memory_space<vmem>>, vector<1x1x32xf32>
    %167 = vector.shape_cast %166 : vector<1x1x32xf32> to vector<1x32xf32>
    %168 = vector.broadcast %167 : vector<1x32xf32> to vector<8x32xf32>
    %169 = arith.addf %165, %168 : vector<8x32xf32>
    %170 = arith.addf %151, %169 : vector<8x32xf32>
    %cst_76 = arith.constant dense<0.000000e+00> : vector<8xf32>
    %171 = vector.multi_reduction <add>, %170, %cst_76 [1] : vector<8x32xf32> to vector<8xf32>
    %172 = vector.shape_cast %171 : vector<8xf32> to vector<8x1xf32>
    %cst_77 = arith.constant 3.200000e+01 : f32
    %173 = vector.broadcast %cst_77 : f32 to vector<8x1xf32>
    %174 = arith.divf %172, %173 : vector<8x1xf32>
    %175 = vector.broadcast %174 : vector<8x1xf32> to vector<8x32xf32>
    %176 = arith.subf %170, %175 : vector<8x32xf32>
    %177 = arith.mulf %176, %176 : vector<8x32xf32>
    %cst_78 = arith.constant dense<0.000000e+00> : vector<8xf32>
    %178 = vector.multi_reduction <add>, %177, %cst_78 [1] : vector<8x32xf32> to vector<8xf32>
    %179 = vector.shape_cast %178 : vector<8xf32> to vector<8x1xf32>
    %cst_79 = arith.constant 3.200000e+01 : f32
    %180 = vector.broadcast %cst_79 : f32 to vector<8x1xf32>
    %181 = arith.divf %179, %180 : vector<8x1xf32>
    %182 = vector.broadcast %174 : vector<8x1xf32> to vector<8x32xf32>
    %183 = arith.subf %170, %182 : vector<8x32xf32>
    %cst_80 = arith.constant 9.99999974E-6 : f32
    %184 = vector.broadcast %cst_80 : f32 to vector<8x1xf32>
    %185 = arith.addf %181, %184 : vector<8x1xf32>
    %186 = math.rsqrt %185 : vector<8x1xf32>
    %187 = vector.broadcast %186 : vector<8x1xf32> to vector<8x32xf32>
    %188 = arith.mulf %183, %187 : vector<8x32xf32>
    %c0_81 = arith.constant 0 : index
    %c0_82 = arith.constant 0 : index
    %c0_83 = arith.constant 0 : index
    %189 = vector.load %arg14[%c0_81, %c0_82, %c0_83] : memref<1x1x32xf32, #tpu.memory_space<vmem>>, vector<1x1x32xf32>
    %190 = vector.shape_cast %189 : vector<1x1x32xf32> to vector<1x32xf32>
    %191 = vector.broadcast %190 : vector<1x32xf32> to vector<8x32xf32>
    %192 = arith.mulf %188, %191 : vector<8x32xf32>
    %c0_84 = arith.constant 0 : index
    %c0_85 = arith.constant 0 : index
    %c0_86 = arith.constant 0 : index
    %193 = vector.load %arg15[%c0_84, %c0_85, %c0_86] : memref<1x1x32xf32, #tpu.memory_space<vmem>>, vector<1x1x32xf32>
    %194 = vector.shape_cast %193 : vector<1x1x32xf32> to vector<1x32xf32>
    %195 = vector.broadcast %194 : vector<1x32xf32> to vector<8x32xf32>
    %196 = arith.addf %192, %195 : vector<8x32xf32>
    %c0_87 = arith.constant 0 : index
    %c0_88 = arith.constant 0 : index
    %197 = vector.load %arg19[%c0_87, %c0_88] : memref<8x32xf32, #tpu.memory_space<vmem>>, vector<8x32xf32>
    tpu.vector_store %arg19[%c0_87, %c0_88], %196 {strides = array<i32>} : memref<8x32xf32, #tpu.memory_space<vmem>>, vector<8x32xf32>,
    %c1_i32 = arith.constant 1 : i32
    %198 = arith.cmpi eq, %arg1, %c1_i32 : i32
    %199 = arith.extui %198 : i1 to i32
    %c0_i32_89 = arith.constant 0 : i32
    %200 = arith.cmpi ne, %199, %c0_i32_89 : i32
    scf.if %200 {
      %201 = vector.shape_cast %196 : vector<8x32xf32> to vector<1x8x32xf32>
      %cst_90 = arith.constant dense<0xFF800000> : vector<1x32xf32>
      %202 = vector.multi_reduction <maximumf>, %201, %cst_90 [1] : vector<1x8x32xf32> to vector<1x32xf32>
      %c0_91 = arith.constant 0 : index
      %c0_92 = arith.constant 0 : index
      %203 = vector.load %arg16[%c0_91, %c0_92] : memref<32x2xf32, #tpu.memory_space<vmem>>, vector<32x2xf32>
      %cst_93 = arith.constant dense<0.000000e+00> : vector<1x2xf32>
      %204 = tpu.matmul %202, %203, %cst_93 {dimension_numbers = #tpu.dot_dimension_numbers<[1], [0], [0], [1], [0, 0, 1, 1], [], []>} : vector<1x32xf32>, vector<32x2xf32>, vector<1x2xf32> -> vector<1x2xf32>
      %c0_94 = arith.constant 0 : index
      %c0_95 = arith.constant 0 : index
      %205 = vector.load %arg17[%c0_94, %c0_95] : memref<1x2xf32, #tpu.memory_space<vmem>>, vector<1x2xf32>
      %206 = arith.addf %204, %205 : vector<1x2xf32>
      %cst_96 = arith.constant dense<0xFF800000> : vector<1xf32>
      %207 = vector.multi_reduction <maximumf>, %206, %cst_96 [1] : vector<1x2xf32> to vector<1xf32>
      %208 = vector.shape_cast %207 : vector<1xf32> to vector<1x1xf32>
      %209 = vector.broadcast %208 : vector<1x1xf32> to vector<1x2xf32>
      %210 = arith.subf %206, %209 : vector<1x2xf32>
      %211 = math.exp %210 : vector<1x2xf32>
      %cst_97 = arith.constant dense<0.000000e+00> : vector<1xf32>
      %212 = vector.multi_reduction <add>, %211, %cst_97 [1] : vector<1x2xf32> to vector<1xf32>
      %213 = vector.shape_cast %212 : vector<1xf32> to vector<1x1xf32>
      %214 = vector.broadcast %213 : vector<1x1xf32> to vector<1x2xf32>
      %215 = arith.divf %211, %214 : vector<1x2xf32>
      %216 = vector.shape_cast %215 : vector<1x2xf32> to vector<1x1x2xf32>
      %c0_98 = arith.constant 0 : index
      %c0_99 = arith.constant 0 : index
      %c0_100 = arith.constant 0 : index
      %217 = vector.load %arg18[%c0_98, %c0_99, %c0_100] : memref<1x1x2xf32, #tpu.memory_space<vmem>>, vector<1x1x2xf32>
      tpu.vector_store %arg18[%c0_98, %c0_99, %c0_100], %216 {strides = array<i32>} : memref<1x1x2xf32, #tpu.memory_space<vmem>>, vector<1x1x2xf32>,
    } else {
    }
    return
  }
  func.func @transform_0(%arg0: i32, %arg1: i32) -> (i32, i32, i32) {
    %c0_i32 = arith.constant 0 : i32
    %c0_i32_0 = arith.constant 0 : i32
    %c0_i32_1 = arith.constant 0 : i32
    return %arg0, %c0_i32, %c0_i32_0 : i32, i32, i32
  }
  func.func @transform_1(%arg0: i32, %arg1: i32) -> (i32, i32, i32) {
    %c0_i32 = arith.constant 0 : i32
    %c0_i32_0 = arith.constant 0 : i32
    %c0_i32_1 = arith.constant 0 : i32
    return %arg0, %c0_i32, %c0_i32_0 : i32, i32, i32
  }
  func.func @transform_2(%arg0: i32, %arg1: i32) -> (i32, i32, i32) {
    %c0_i32 = arith.constant 0 : i32
    %c0_i32_0 = arith.constant 0 : i32
    %c0_i32_1 = arith.constant 0 : i32
    return %arg1, %c0_i32, %c0_i32_0 : i32, i32, i32
  }
  func.func @transform_3(%arg0: i32, %arg1: i32) -> (i32, i32, i32) {
    %c0_i32 = arith.constant 0 : i32
    %c0_i32_0 = arith.constant 0 : i32
    %c0_i32_1 = arith.constant 0 : i32
    return %arg1, %c0_i32, %c0_i32_0 : i32, i32, i32
  }
  func.func @transform_4(%arg0: i32, %arg1: i32) -> (i32, i32, i32) {
    %c0_i32 = arith.constant 0 : i32
    %c0_i32_0 = arith.constant 0 : i32
    %c0_i32_1 = arith.constant 0 : i32
    return %arg1, %c0_i32, %c0_i32_0 : i32, i32, i32
  }
  func.func @transform_5(%arg0: i32, %arg1: i32) -> (i32, i32, i32) {
    %c0_i32 = arith.constant 0 : i32
    %c0_i32_0 = arith.constant 0 : i32
    %c0_i32_1 = arith.constant 0 : i32
    return %arg1, %c0_i32, %c0_i32_0 : i32, i32, i32
  }
  func.func @transform_6(%arg0: i32, %arg1: i32) -> (i32, i32, i32) {
    %c0_i32 = arith.constant 0 : i32
    %c0_i32_0 = arith.constant 0 : i32
    %c0_i32_1 = arith.constant 0 : i32
    return %arg1, %c0_i32, %c0_i32_0 : i32, i32, i32
  }
  func.func @transform_7(%arg0: i32, %arg1: i32) -> (i32, i32, i32) {
    %c0_i32 = arith.constant 0 : i32
    %c0_i32_0 = arith.constant 0 : i32
    %c0_i32_1 = arith.constant 0 : i32
    return %arg1, %c0_i32, %c0_i32_0 : i32, i32, i32
  }
  func.func @transform_8(%arg0: i32, %arg1: i32) -> (i32, i32, i32) {
    %c0_i32 = arith.constant 0 : i32
    %c0_i32_0 = arith.constant 0 : i32
    %c0_i32_1 = arith.constant 0 : i32
    return %arg1, %c0_i32, %c0_i32_0 : i32, i32, i32
  }
  func.func @transform_9(%arg0: i32, %arg1: i32) -> (i32, i32, i32) {
    %c0_i32 = arith.constant 0 : i32
    %c0_i32_0 = arith.constant 0 : i32
    %c0_i32_1 = arith.constant 0 : i32
    return %arg1, %c0_i32, %c0_i32_0 : i32, i32, i32
  }
  func.func @transform_10(%arg0: i32, %arg1: i32) -> (i32, i32, i32) {
    %c0_i32 = arith.constant 0 : i32
    %c0_i32_0 = arith.constant 0 : i32
    %c0_i32_1 = arith.constant 0 : i32
    return %arg1, %c0_i32, %c0_i32_0 : i32, i32, i32
  }
  func.func @transform_11(%arg0: i32, %arg1: i32) -> (i32, i32, i32) {
    %c0_i32 = arith.constant 0 : i32
    %c0_i32_0 = arith.constant 0 : i32
    %c0_i32_1 = arith.constant 0 : i32
    return %arg1, %c0_i32, %c0_i32_0 : i32, i32, i32
  }
  func.func @transform_12(%arg0: i32, %arg1: i32) -> (i32, i32, i32) {
    %c0_i32 = arith.constant 0 : i32
    %c0_i32_0 = arith.constant 0 : i32
    %c0_i32_1 = arith.constant 0 : i32
    return %arg1, %c0_i32, %c0_i32_0 : i32, i32, i32
  }
  func.func @transform_13(%arg0: i32, %arg1: i32) -> (i32, i32, i32) {
    %c0_i32 = arith.constant 0 : i32
    %c0_i32_0 = arith.constant 0 : i32
    %c0_i32_1 = arith.constant 0 : i32
    return %arg1, %c0_i32, %c0_i32_0 : i32, i32, i32
  }
  func.func @transform_14(%arg0: i32, %arg1: i32) -> (i32, i32) {
    %c0_i32 = arith.constant 0 : i32
    %c0_i32_0 = arith.constant 0 : i32
    %c0_i32_1 = arith.constant 0 : i32
    return %c0_i32, %c0_i32_0 : i32, i32
  }
  func.func @transform_15(%arg0: i32, %arg1: i32) -> (i32, i32) {
    %c0_i32 = arith.constant 0 : i32
    %c0_i32_0 = arith.constant 0 : i32
    %c0_i32_1 = arith.constant 0 : i32
    return %c0_i32, %c0_i32_0 : i32, i32
  }
  func.func @transform_16(%arg0: i32, %arg1: i32) -> (i32, i32, i32) {
    %c0_i32 = arith.constant 0 : i32
    %c0_i32_0 = arith.constant 0 : i32
    %c0_i32_1 = arith.constant 0 : i32
    return %arg0, %c0_i32, %c0_i32_0 : i32, i32, i32
  }
}

</mosaic_0001>

<llo_original>
// kernel: tpu_custom_call.1
$region0: #{tpu_custom_call.1}
  #allocation0 [shape = 'u32[]', space=smem, size = 0x4, offset = 0x4, fixed_abs, tag = 'smem constant byte address 0x4 - core index']
  #allocation1 [shape = 'u32[144,128]{1,0:T(1,128)}', space=vmem, size = 0x12000, scoped, tag = 'internal scratch']
  #allocation2 [shape = 'f32[8,32]{1,0:T(8,128)}', space=vmem, size = 0x1000, scoped, tag = 'scratch operand']
  #allocation3 [shape = 'f32[1,8,32]{2,1,0:T(8,128)}', space=vmem, size = 0x1000, scoped, tag = 'scratch operand']
  %s0 = inlined_call_operand.vmem [shape: f32[2,8,32], index: 0, kind: input, shape index: {}]
  %s1 = inlined_call_operand.vmem [shape: f32[2,1,8], index: 1, kind: input, shape index: {}]
  %s2 = inlined_call_operand.vmem [shape: bf16[2,32,96], index: 2, kind: input, shape index: {}]
  %s3 = inlined_call_operand.vmem [shape: f32[2,1,96], index: 3, kind: input, shape index: {}]
  %s4 = inlined_call_operand.vmem [shape: bf16[2,32,32], index: 4, kind: input, shape index: {}]
  %s5 = inlined_call_operand.vmem [shape: f32[2,1,32], index: 5, kind: input, shape index: {}]
  %s6 = inlined_call_operand.vmem [shape: f32[2,1,32], index: 6, kind: input, shape index: {}]
  %s7 = inlined_call_operand.vmem [shape: f32[2,1,32], index: 7, kind: input, shape index: {}]
  %s8 = inlined_call_operand.vmem [shape: bf16[2,32,64], index: 8, kind: input, shape index: {}]
  %s9 = inlined_call_operand.vmem [shape: f32[2,1,64], index: 9, kind: input, shape index: {}]
  %s10 = inlined_call_operand.vmem [shape: bf16[2,64,32], index: 10, kind: input, shape index: {}]
  %s11 = inlined_call_operand.vmem [shape: f32[2,1,32], index: 11, kind: input, shape index: {}]
  %s12 = inlined_call_operand.vmem [shape: f32[2,1,32], index: 12, kind: input, shape index: {}]
  %s13 = inlined_call_operand.vmem [shape: f32[2,1,32], index: 13, kind: input, shape index: {}]
  %s14 = inlined_call_operand.vmem [shape: f32[32,2], index: 14, kind: input, shape index: {}]
  %s15 = inlined_call_operand.vmem [shape: f32[1,2], index: 15, kind: input, shape index: {}]
  %s16 = inlined_call_operand.hbm [shape: f32[2,1,2], index: 16, kind: output, shape index: {}]
  %s17 = sld [smem:[#allocation0]]
  $region105: #{tpu_custom_call.1} parent=0
    _
  %s19 = ssub.s32 1, %s17
  %s20 = scalar_select 0, %s19, %s17
  $region1: #{tpu_custom_call.1} parent=0
    #allocation4 [shape = 'u8[1024]{0}', space=vmem, size = 0x400, scoped, tag = 'output window, operand 0']
    #allocation5 [shape = 's32[2]{0}', space=sflag, size = 0x8, scoped, tag = 'scoped memory for tpu_custom_call.1']
    %21 = vsyncpa [#allocation5], 0
    %s22 = scalar_lea.sflag [#allocation5], 1
    %23 = vsyncpa %s22, 0
    loop: start=0, step=1, limit=6
    $region2: #{tpu_custom_call.1} parent=1 // loop_pre_header
      _
    $region3: #{tpu_custom_call.1} parent=1 // loop_header
      %s25 = sphi 0, %s29
      %p26 = scmp.ge.s32.totalorder %s25, 6
      %s32 = sphi 0, %s44
      %s33 = sphi 0, %s40
      %s34 = sphi 0, %s32
      %s35 = sphi 0, %s33
      %s36 = sphi 0, %s34
      %s37 = sphi 0, %s35
      %s47 = sphi 0, %s49
      %s50 = sphi 0, %s47
      %s51 = sphi 0, %s50
      %s67 = sphi 0, %s51
      %s73 = sphi 0, %s75
      %s76 = sphi 0, %s73
      %s77 = sphi 0, %s76
      %s93 = sphi 0, %s77
      %s99 = sphi 0, %s101
      %s102 = sphi 0, %s99
      %s103 = sphi 0, %s102
      %s119 = sphi 0, %s103
      %s125 = sphi 0, %s127
      %s128 = sphi 0, %s125
      %s129 = sphi 0, %s128
      %s145 = sphi 0, %s129
      %s151 = sphi 0, %s153
      %s154 = sphi 0, %s151
      %s155 = sphi 0, %s154
      %s171 = sphi 0, %s155
      %s177 = sphi 0, %s179
      %s180 = sphi 0, %s177
      %s181 = sphi 0, %s180
      %s197 = sphi 0, %s181
      %s203 = sphi 0, %s205
      %s206 = sphi 0, %s203
      %s207 = sphi 0, %s206
      %s223 = sphi 0, %s207
      %s229 = sphi 0, %s231
      %s232 = sphi 0, %s229
      %s233 = sphi 0, %s232
      %s249 = sphi 0, %s233
      %s255 = sphi 0, %s257
      %s258 = sphi 0, %s255
      %s259 = sphi 0, %s258
      %s275 = sphi 0, %s259
      %s281 = sphi 0, %s283
      %s284 = sphi 0, %s281
      %s285 = sphi 0, %s284
      %s301 = sphi 0, %s285
      %s307 = sphi 0, %s309
      %s310 = sphi 0, %s307
      %s311 = sphi 0, %s310
      %s327 = sphi 0, %s311
      %s333 = sphi 0, %s335
      %s336 = sphi 0, %s333
      %s337 = sphi 0, %s336
      %s353 = sphi 0, %s337
      %s359 = sphi 0, %s361
      %s362 = sphi 0, %s359
      %s363 = sphi 0, %s362
      %s379 = sphi 0, %s363
      %s385 = sphi 0, %s387
      %s388 = sphi 0, %s385
      %s389 = sphi 0, %s388
      %s405 = sphi 0, %s389
      %s409 = sphi 0, %s409
      %s411 = sphi 0, %s409
      %s412 = sphi 0, %s411
      %s426 = sphi 0, %s412
      %s430 = sphi 0, %s430
      %s432 = sphi 0, %s430
      %s433 = sphi 0, %s432
      %s447 = sphi 0, %s433
      %s453 = sphi 0, %s455
      %s456 = sphi 0, %s453
      %s457 = sphi 0, %s456
      %s473 = sphi 0, %s457
    $region4: #{tpu_custom_call.1} parent=1 // loop_header_branch
      %28 = sbr.rel (%p26) target = $region8
    $region5: #{tpu_custom_call.1} parent=1 // loop_body
      %s30 = ssub.s32 %s25, 1
      %s31 = ssub.s32 %s25, 2
      %s38 = sadd.s32 1, %s33
      %p39 = scmp.ge.s32.totalorder %s38, 2
      %s40 = scalar_select %p39, 0, %s38
      %s41 = sadd.s32 1, %s32
      %s42 = scalar_select %p39, %s41, %s32
      %p43 = scmp.ge.s32.totalorder %s42, 2
      %s44 = scalar_select %p43, 0, %s42
      %s45 = ssub.s32 %s32, %s44
      %p46 = scmp.eq.s32.totalorder %s45, 0
      %s48 = sadd.s32 %s47, 1
      %s49 = scalar_select %p46, %s47, %s48
      %p52 = pneg %p46
      %p53 = scmp.eq.s32.totalorder %s25, 3
      %p54 = por %p52, %p53
      %p55 = scmp.ne.s32.totalorder %s47, %s50
      %p56 = scmp.eq.s32.totalorder %s25, 0
      %p57 = por %p55, %p56
      %p58 = scmp.ne.s32.totalorder %s47, %s50
      %p59 = scmp.eq.s32.totalorder %s30, 3
      %p60 = por %p58, %p59
      %p61 = scmp.ne.s32.totalorder %s50, %s51
      %p62 = scmp.eq.s32.totalorder %s30, 0
      %p63 = por %p61, %p62
      %p64 = scmp.ne.s32.totalorder %s50, %s51
      %p65 = scmp.eq.s32.totalorder %s31, 3
      %p66 = por %p64, %p65
      %p68 = scmp.ne.s32.totalorder %s51, %s67
      %p69 = scmp.eq.s32.totalorder %s31, 0
      %p70 = por %p68, %p69
      %s71 = ssub.s32 %s32, %s44
      %p72 = scmp.eq.s32.totalorder %s71, 0
      %s74 = sadd.s32 %s73, 1
      %s75 = scalar_select %p72, %s73, %s74
      %p78 = pneg %p72
      %p79 = scmp.eq.s32.totalorder %s25, 3
      %p80 = por %p78, %p79
      %p81 = scmp.ne.s32.totalorder %s73, %s76
      %p82 = scmp.eq.s32.totalorder %s25, 0
      %p83 = por %p81, %p82
      %p84 = scmp.ne.s32.totalorder %s73, %s76
      %p85 = scmp.eq.s32.totalorder %s30, 3
      %p86 = por %p84, %p85
      %p87 = scmp.ne.s32.totalorder %s76, %s77
      %p88 = scmp.eq.s32.totalorder %s30, 0
      %p89 = por %p87, %p88
      %p90 = scmp.ne.s32.totalorder %s76, %s77
      %p91 = scmp.eq.s32.totalorder %s31, 3
      %p92 = por %p90, %p91
      %p94 = scmp.ne.s32.totalorder %s77, %s93
      %p95 = scmp.eq.s32.totalorder %s31, 0
      %p96 = por %p94, %p95
      %s97 = ssub.s32 %s33, %s40
      %p98 = scmp.eq.s32.totalorder %s97, 0
      %s100 = sadd.s32 %s99, 1
      %s101 = scalar_select %p98, %s99, %s100
      %p104 = pneg %p98
      %p105 = scmp.eq.s32.totalorder %s25, 3
      %p106 = por %p104, %p105
      %p107 = scmp.ne.s32.totalorder %s99, %s102
      %p108 = scmp.eq.s32.totalorder %s25, 0
      %p109 = por %p107, %p108
      %p110 = scmp.ne.s32.totalorder %s99, %s102
      %p111 = scmp.eq.s32.totalorder %s30, 3
      %p112 = por %p110, %p111
      %p113 = scmp.ne.s32.totalorder %s102, %s103
      %p114 = scmp.eq.s32.totalorder %s30, 0
      %p115 = por %p113, %p114
      %p116 = scmp.ne.s32.totalorder %s102, %s103
      %p117 = scmp.eq.s32.totalorder %s31, 3
      %p118 = por %p116, %p117
      %p120 = scmp.ne.s32.totalorder %s103, %s119
      %p121 = scmp.eq.s32.totalorder %s31, 0
      %p122 = por %p120, %p121
      %s123 = ssub.s32 %s33, %s40
      %p124 = scmp.eq.s32.totalorder %s123, 0
      %s126 = sadd.s32 %s125, 1
      %s127 = scalar_select %p124, %s125, %s126
      %p130 = pneg %p124
      %p131 = scmp.eq.s32.totalorder %s25, 3
      %p132 = por %p130, %p131
      %p133 = scmp.ne.s32.totalorder %s125, %s128
      %p134 = scmp.eq.s32.totalorder %s25, 0
      %p135 = por %p133, %p134
      %p136 = scmp.ne.s32.totalorder %s125, %s128
      %p137 = scmp.eq.s32.totalorder %s30, 3
      %p138 = por %p136, %p137
      %p139 = scmp.ne.s32.totalorder %s128, %s129
      %p140 = scmp.eq.s32.totalorder %s30, 0
      %p141 = por %p139, %p140
      %p142 = scmp.ne.s32.totalorder %s128, %s129
      %p143 = scmp.eq.s32.totalorder %s31, 3
      %p144 = por %p142, %p143
      %p146 = scmp.ne.s32.totalorder %s129, %s145
      %p147 = scmp.eq.s32.totalorder %s31, 0
      %p148 = por %p146, %p147
      %s149 = ssub.s32 %s33, %s40
      %p150 = scmp.eq.s32.totalorder %s149, 0
      %s152 = sadd.s32 %s151, 1
      %s153 = scalar_select %p150, %s151, %s152
      %p156 = pneg %p150
      %p157 = scmp.eq.s32.totalorder %s25, 3
      %p158 = por %p156, %p157
      %p159 = scmp.ne.s32.totalorder %s151, %s154
      %p160 = scmp.eq.s32.totalorder %s25, 0
      %p161 = por %p159, %p160
      %p162 = scmp.ne.s32.totalorder %s151, %s154
      %p163 = scmp.eq.s32.totalorder %s30, 3
      %p164 = por %p162, %p163
      %p165 = scmp.ne.s32.totalorder %s154, %s155
      %p166 = scmp.eq.s32.totalorder %s30, 0
      %p167 = por %p165, %p166
      %p168 = scmp.ne.s32.totalorder %s154, %s155
      %p169 = scmp.eq.s32.totalorder %s31, 3
      %p170 = por %p168, %p169
      %p172 = scmp.ne.s32.totalorder %s155, %s171
      %p173 = scmp.eq.s32.totalorder %s31, 0
      %p174 = por %p172, %p173
      %s175 = ssub.s32 %s33, %s40
      %p176 = scmp.eq.s32.totalorder %s175, 0
      %s178 = sadd.s32 %s177, 1
      %s179 = scalar_select %p176, %s177, %s178
      %p182 = pneg %p176
      %p183 = scmp.eq.s32.totalorder %s25, 3
      %p184 = por %p182, %p183
      %p185 = scmp.ne.s32.totalorder %s177, %s180
      %p186 = scmp.eq.s32.totalorder %s25, 0
      %p187 = por %p185, %p186
      %p188 = scmp.ne.s32.totalorder %s177, %s180
      %p189 = scmp.eq.s32.totalorder %s30, 3
      %p190 = por %p188, %p189
      %p191 = scmp.ne.s32.totalorder %s180, %s181
      %p192 = scmp.eq.s32.totalorder %s30, 0
      %p193 = por %p191, %p192
      %p194 = scmp.ne.s32.totalorder %s180, %s181
      %p195 = scmp.eq.s32.totalorder %s31, 3
      %p196 = por %p194, %p195
      %p198 = scmp.ne.s32.totalorder %s181, %s197
      %p199 = scmp.eq.s32.totalorder %s31, 0
      %p200 = por %p198, %p199
      %s201 = ssub.s32 %s33, %s40
      %p202 = scmp.eq.s32.totalorder %s201, 0
      %s204 = sadd.s32 %s203, 1
      %s205 = scalar_select %p202, %s203, %s204
      %p208 = pneg %p202
      %p209 = scmp.eq.s32.totalorder %s25, 3
      %p210 = por %p208, %p209
      %p211 = scmp.ne.s32.totalorder %s203, %s206
      %p212 = scmp.eq.s32.totalorder %s25, 0
      %p213 = por %p211, %p212
      %p214 = scmp.ne.s32.totalorder %s203, %s206
      %p215 = scmp.eq.s32.totalorder %s30, 3
      %p216 = por %p214, %p215
      %p217 = scmp.ne.s32.totalorder %s206, %s207
      %p218 = scmp.eq.s32.totalorder %s30, 0
      %p219 = por %p217, %p218
      %p220 = scmp.ne.s32.totalorder %s206, %s207
      %p221 = scmp.eq.s32.totalorder %s31, 3
      %p222 = por %p220, %p221
      %p224 = scmp.ne.s32.totalorder %s207, %s223
      %p225 = scmp.eq.s32.totalorder %s31, 0
      %p226 = por %p224, %p225
      %s227 = ssub.s32 %s33, %s40
      %p228 = scmp.eq.s32.totalorder %s227, 0
      %s230 = sadd.s32 %s229, 1
      %s231 = scalar_select %p228, %s229, %s230
      %p234 = pneg %p228
      %p235 = scmp.eq.s32.totalorder %s25, 3
      %p236 = por %p234, %p235
      %p237 = scmp.ne.s32.totalorder %s229, %s232
      %p238 = scmp.eq.s32.totalorder %s25, 0
      %p239 = por %p237, %p238
      %p240 = scmp.ne.s32.totalorder %s229, %s232
      %p241 = scmp.eq.s32.totalorder %s30, 3
      %p242 = por %p240, %p241
      %p243 = scmp.ne.s32.totalorder %s232, %s233
      %p244 = scmp.eq.s32.totalorder %s30, 0
      %p245 = por %p243, %p244
      %p246 = scmp.ne.s32.totalorder %s232, %s233
      %p247 = scmp.eq.s32.totalorder %s31, 3
      %p248 = por %p246, %p247
      %p250 = scmp.ne.s32.totalorder %s233, %s249
      %p251 = scmp.eq.s32.totalorder %s31, 0
      %p252 = por %p250, %p251
      %s253 = ssub.s32 %s33, %s40
      %p254 = scmp.eq.s32.totalorder %s253, 0
      %s256 = sadd.s32 %s255, 1
      %s257 = scalar_select %p254, %s255, %s256
      %p260 = pneg %p254
      %p261 = scmp.eq.s32.totalorder %s25, 3
      %p262 = por %p260, %p261
      %p263 = scmp.ne.s32.totalorder %s255, %s258
      %p264 = scmp.eq.s32.totalorder %s25, 0
      %p265 = por %p263, %p264
      %p266 = scmp.ne.s32.totalorder %s255, %s258
      %p267 = scmp.eq.s32.totalorder %s30, 3
      %p268 = por %p266, %p267
      %p269 = scmp.ne.s32.totalorder %s258, %s259
      %p270 = scmp.eq.s32.totalorder %s30, 0
      %p271 = por %p269, %p270
      %p272 = scmp.ne.s32.totalorder %s258, %s259
      %p273 = scmp.eq.s32.totalorder %s31, 3
      %p274 = por %p272, %p273
      %p276 = scmp.ne.s32.totalorder %s259, %s275
      %p277 = scmp.eq.s32.totalorder %s31, 0
      %p278 = por %p276, %p277
      %s279 = ssub.s32 %s33, %s40
      %p280 = scmp.eq.s32.totalorder %s279, 0
      %s282 = sadd.s32 %s281, 1
      %s283 = scalar_select %p280, %s281, %s282
      %p286 = pneg %p280
      %p287 = scmp.eq.s32.totalorder %s25, 3
      %p288 = por %p286, %p287
      %p289 = scmp.ne.s32.totalorder %s281, %s284
      %p290 = scmp.eq.s32.totalorder %s25, 0
      %p291 = por %p289, %p290
      %p292 = scmp.ne.s32.totalorder %s281, %s284
      %p293 = scmp.eq.s32.totalorder %s30, 3
      %p294 = por %p292, %p293
      %p295 = scmp.ne.s32.totalorder %s284, %s285
      %p296 = scmp.eq.s32.totalorder %s30, 0
      %p297 = por %p295, %p296
      %p298 = scmp.ne.s32.totalorder %s284, %s285
      %p299 = scmp.eq.s32.totalorder %s31, 3
      %p300 = por %p298, %p299
      %p302 = scmp.ne.s32.totalorder %s285, %s301
      %p303 = scmp.eq.s32.totalorder %s31, 0
      %p304 = por %p302, %p303
      %s305 = ssub.s32 %s33, %s40
      %p306 = scmp.eq.s32.totalorder %s305, 0
      %s308 = sadd.s32 %s307, 1
      %s309 = scalar_select %p306, %s307, %s308
      %p312 = pneg %p306
      %p313 = scmp.eq.s32.totalorder %s25, 3
      %p314 = por %p312, %p313
      %p315 = scmp.ne.s32.totalorder %s307, %s310
      %p316 = scmp.eq.s32.totalorder %s25, 0
      %p317 = por %p315, %p316
      %p318 = scmp.ne.s32.totalorder %s307, %s310
      %p319 = scmp.eq.s32.totalorder %s30, 3
      %p320 = por %p318, %p319
      %p321 = scmp.ne.s32.totalorder %s310, %s311
      %p322 = scmp.eq.s32.totalorder %s30, 0
      %p323 = por %p321, %p322
      %p324 = scmp.ne.s32.totalorder %s310, %s311
      %p325 = scmp.eq.s32.totalorder %s31, 3
      %p326 = por %p324, %p325
      %p328 = scmp.ne.s32.totalorder %s311, %s327
      %p329 = scmp.eq.s32.totalorder %s31, 0
      %p330 = por %p328, %p329
      %s331 = ssub.s32 %s33, %s40
      %p332 = scmp.eq.s32.totalorder %s331, 0
      %s334 = sadd.s32 %s333, 1
      %s335 = scalar_select %p332, %s333, %s334
      %p338 = pneg %p332
      %p339 = scmp.eq.s32.totalorder %s25, 3
      %p340 = por %p338, %p339
      %p341 = scmp.ne.s32.totalorder %s333, %s336
      %p342 = scmp.eq.s32.totalorder %s25, 0
      %p343 = por %p341, %p342
      %p344 = scmp.ne.s32.totalorder %s333, %s336
      %p345 = scmp.eq.s32.totalorder %s30, 3
      %p346 = por %p344, %p345
      %p347 = scmp.ne.s32.totalorder %s336, %s337
      %p348 = scmp.eq.s32.totalorder %s30, 0
      %p349 = por %p347, %p348
      %p350 = scmp.ne.s32.totalorder %s336, %s337
      %p351 = scmp.eq.s32.totalorder %s31, 3
      %p352 = por %p350, %p351
      %p354 = scmp.ne.s32.totalorder %s337, %s353
      %p355 = scmp.eq.s32.totalorder %s31, 0
      %p356 = por %p354, %p355
      %s357 = ssub.s32 %s33, %s40
      %p358 = scmp.eq.s32.totalorder %s357, 0
      %s360 = sadd.s32 %s359, 1
      %s361 = scalar_select %p358, %s359, %s360
      %p364 = pneg %p358
      %p365 = scmp.eq.s32.totalorder %s25, 3
      %p366 = por %p364, %p365
      %p367 = scmp.ne.s32.totalorder %s359, %s362
      %p368 = scmp.eq.s32.totalorder %s25, 0
      %p369 = por %p367, %p368
      %p370 = scmp.ne.s32.totalorder %s359, %s362
      %p371 = scmp.eq.s32.totalorder %s30, 3
      %p372 = por %p370, %p371
      %p373 = scmp.ne.s32.totalorder %s362, %s363
      %p374 = scmp.eq.s32.totalorder %s30, 0
      %p375 = por %p373, %p374
      %p376 = scmp.ne.s32.totalorder %s362, %s363
      %p377 = scmp.eq.s32.totalorder %s31, 3
      %p378 = por %p376, %p377
      %p380 = scmp.ne.s32.totalorder %s363, %s379
      %p381 = scmp.eq.s32.totalorder %s31, 0
      %p382 = por %p380, %p381
      %s383 = ssub.s32 %s33, %s40
      %p384 = scmp.eq.s32.totalorder %s383, 0
      %s386 = sadd.s32 %s385, 1
      %s387 = scalar_select %p384, %s385, %s386
      %p390 = pneg %p384
      %p391 = scmp.eq.s32.totalorder %s25, 3
      %p392 = por %p390, %p391
      %p393 = scmp.ne.s32.totalorder %s385, %s388
      %p394 = scmp.eq.s32.totalorder %s25, 0
      %p395 = por %p393, %p394
      %p396 = scmp.ne.s32.totalorder %s385, %s388
      %p397 = scmp.eq.s32.totalorder %s30, 3
      %p398 = por %p396, %p397
      %p399 = scmp.ne.s32.totalorder %s388, %s389
      %p400 = scmp.eq.s32.totalorder %s30, 0
      %p401 = por %p399, %p400
      %p402 = scmp.ne.s32.totalorder %s388, %s389
      %p403 = scmp.eq.s32.totalorder %s31, 3
      %p404 = por %p402, %p403
      %p406 = scmp.ne.s32.totalorder %s389, %s405
      %p407 = scmp.eq.s32.totalorder %s31, 0
      %p408 = por %p406, %p407
      %s410 = sadd.s32 %s409, 1
      %p413 = scmp.eq.s32.totalorder %s25, 3
      %p414 = scmp.ne.s32.totalorder %s409, %s411
      %p415 = scmp.eq.s32.totalorder %s25, 0
      %p416 = por %p414, %p415
      %p417 = scmp.ne.s32.totalorder %s409, %s411
      %p418 = scmp.eq.s32.totalorder %s30, 3
      %p419 = por %p417, %p418
      %p420 = scmp.ne.s32.totalorder %s411, %s412
      %p421 = scmp.eq.s32.totalorder %s30, 0
      %p422 = por %p420, %p421
      %p423 = scmp.ne.s32.totalorder %s411, %s412
      %p424 = scmp.eq.s32.totalorder %s31, 3
      %p425 = por %p423, %p424
      %p427 = scmp.ne.s32.totalorder %s412, %s426
      %p428 = scmp.eq.s32.totalorder %s31, 0
      %p429 = por %p427, %p428
      %s431 = sadd.s32 %s430, 1
      %p434 = scmp.eq.s32.totalorder %s25, 3
      %p435 = scmp.ne.s32.totalorder %s430, %s432
      %p436 = scmp.eq.s32.totalorder %s25, 0
      %p437 = por %p435, %p436
      %p438 = scmp.ne.s32.totalorder %s430, %s432
      %p439 = scmp.eq.s32.totalorder %s30, 3
      %p440 = por %p438, %p439
      %p441 = scmp.ne.s32.totalorder %s432, %s433
      %p442 = scmp.eq.s32.totalorder %s30, 0
      %p443 = por %p441, %p442
      %p444 = scmp.ne.s32.totalorder %s432, %s433
      %p445 = scmp.eq.s32.totalorder %s31, 3
      %p446 = por %p444, %p445
      %p448 = scmp.ne.s32.totalorder %s433, %s447
      %p449 = scmp.eq.s32.totalorder %s31, 0
      %p450 = por %p448, %p449
      %s451 = ssub.s32 %s32, %s44
      %p452 = scmp.eq.s32.totalorder %s451, 0
      %s454 = sadd.s32 %s453, 1
      %s455 = scalar_select %p452, %s453, %s454
      %p458 = pneg %p452
      %p459 = scmp.eq.s32.totalorder %s25, 3
      %p460 = por %p458, %p459
      %p461 = scmp.ne.s32.totalorder %s453, %s456
      %p462 = scmp.eq.s32.totalorder %s25, 0
      %p463 = por %p461, %p462
      %p464 = scmp.ne.s32.totalorder %s453, %s456
      %p465 = scmp.eq.s32.totalorder %s30, 3
      %p466 = por %p464, %p465
      %p467 = scmp.ne.s32.totalorder %s456, %s457
      %p468 = scmp.eq.s32.totalorder %s30, 0
      %p469 = por %p467, %p468
      %p470 = scmp.ne.s32.totalorder %s456, %s457
      %p471 = scmp.eq.s32.totalorder %s31, 3
      %p472 = por %p470, %p471
      %p474 = scmp.ne.s32.totalorder %s457, %s473
      %p475 = scmp.eq.s32.totalorder %s31, 0
      %p476 = por %p474, %p475
      %p477 = scmp.le.s32.totalorder 1, %s25
      %p478 = scmp.lt.s32.totalorder %s25, 5
      %p479 = pnand %p477, %p478
      %p480 = pneg %p479
      // Predicated region
      $region9: #{tpu_custom_call.1} parent=5 // pred_check
        _
      $region10: #{tpu_custom_call.1} parent=5 // pred_check_branch
        %482 = sbr.rel (%p479) target = $region12
      $region11: #{tpu_custom_call.1} parent=5 // pred_region
        %s483 = ssub.s32 %s25, 1
        // Predicated region
        $region13: #{tpu_custom_call.1} parent=11 // pred_check
          %p484 = pneg %p422
        $region14: #{tpu_custom_call.1} parent=11 // pred_check_branch
          %486 = sbr.rel (%p484) target = $region16
        $region15: #{tpu_custom_call.1} parent=11 // pred_region
          _
        $region16: #{tpu_custom_call.1} parent=11 // pred_fallthru
          _
        // Predicated region
        $region17: #{tpu_custom_call.1} parent=11 // pred_check
          %p487 = pneg %p443
        $region18: #{tpu_custom_call.1} parent=11 // pred_check_branch
          %489 = sbr.rel (%p487) target = $region20
        $region19: #{tpu_custom_call.1} parent=11 // pred_region
          _
        $region20: #{tpu_custom_call.1} parent=11 // pred_fallthru
          _
      $region12: #{tpu_custom_call.1} parent=5 // pred_fallthru
        _
      %p490 = scmp.lt.s32.totalorder %s25, 4
      // Predicated region
      $region21: #{tpu_custom_call.1} parent=5 // pred_check
        %p491 = pneg %p490
      $region22: #{tpu_custom_call.1} parent=5 // pred_check_branch
        %493 = sbr.rel (%p491) target = $region24
      $region23: #{tpu_custom_call.1} parent=5 // pred_region
        // Predicated region
        $region25: #{tpu_custom_call.1} parent=23 // pred_check
          %p494 = pneg %p57
        $region26: #{tpu_custom_call.1} parent=23 // pred_check_branch
          %496 = sbr.rel (%p494) target = $region28
        $region27: #{tpu_custom_call.1} parent=23 // pred_region
          %p497 = scmp.lt.s32.totalorder %s32, 1
          %s498 = scalar_select %p497, %s32, 1
          %s499 = smul.addr %s498, 8
          %s500 = scalar_lea.vmem %s0, %s499
        $region28: #{tpu_custom_call.1} parent=23 // pred_fallthru
          _
        // Predicated region
        $region29: #{tpu_custom_call.1} parent=23 // pred_check
          %p501 = pneg %p83
        $region30: #{tpu_custom_call.1} parent=23 // pred_check_branch
          %503 = sbr.rel (%p501) target = $region32
        $region31: #{tpu_custom_call.1} parent=23 // pred_region
          %p504 = scmp.lt.s32.totalorder %s32, 1
          %s505 = scalar_select %p504, %s32, 1
          %s506 = scalar_lea.vmem %s1, %s505
        $region32: #{tpu_custom_call.1} parent=23 // pred_fallthru
          _
        // Predicated region
        $region33: #{tpu_custom_call.1} parent=23 // pred_check
          %p507 = pneg %p109
        $region34: #{tpu_custom_call.1} parent=23 // pred_check_branch
          %509 = sbr.rel (%p507) target = $region36
        $region35: #{tpu_custom_call.1} parent=23 // pred_region
          %p510 = scmp.lt.s32.totalorder %s33, 1
          %s511 = scalar_select %p510, %s33, 1
          %s512 = smul.addr %s511, 4
          %s513 = smul.addr %s512, 4
          %s514 = scalar_lea.vmem %s2, %s513
        $region36: #{tpu_custom_call.1} parent=23 // pred_fallthru
          _
        // Predicated region
        $region37: #{tpu_custom_call.1} parent=23 // pred_check
          %p515 = pneg %p135
        $region38: #{tpu_custom_call.1} parent=23 // pred_check_branch
          %517 = sbr.rel (%p515) target = $region40
        $region39: #{tpu_custom_call.1} parent=23 // pred_region
          %p518 = scmp.lt.s32.totalorder %s33, 1
          %s519 = scalar_select %p518, %s33, 1
          %s520 = scalar_lea.vmem %s3, %s519
        $region40: #{tpu_custom_call.1} parent=23 // pred_fallthru
          _
        // Predicated region
        $region41: #{tpu_custom_call.1} parent=23 // pred_check
          %p521 = pneg %p161
        $region42: #{tpu_custom_call.1} parent=23 // pred_check_branch
          %523 = sbr.rel (%p521) target = $region44
        $region43: #{tpu_custom_call.1} parent=23 // pred_region
          %p524 = scmp.lt.s32.totalorder %s33, 1
          %s525 = scalar_select %p524, %s33, 1
          %s526 = smul.addr %s525, 4
          %s527 = smul.addr %s526, 4
          %s528 = scalar_lea.vmem %s4, %s527
        $region44: #{tpu_custom_call.1} parent=23 // pred_fallthru
          _
        // Predicated region
        $region45: #{tpu_custom_call.1} parent=23 // pred_check
          %p529 = pneg %p187
        $region46: #{tpu_custom_call.1} parent=23 // pred_check_branch
          %531 = sbr.rel (%p529) target = $region48
        $region47: #{tpu_custom_call.1} parent=23 // pred_region
          %p532 = scmp.lt.s32.totalorder %s33, 1
          %s533 = scalar_select %p532, %s33, 1
          %s534 = scalar_lea.vmem %s5, %s533
        $region48: #{tpu_custom_call.1} parent=23 // pred_fallthru
          _
        // Predicated region
        $region49: #{tpu_custom_call.1} parent=23 // pred_check
          %p535 = pneg %p213
        $region50: #{tpu_custom_call.1} parent=23 // pred_check_branch
          %537 = sbr.rel (%p535) target = $region52
        $region51: #{tpu_custom_call.1} parent=23 // pred_region
          %p538 = scmp.lt.s32.totalorder %s33, 1
          %s539 = scalar_select %p538, %s33, 1
          %s540 = scalar_lea.vmem %s6, %s539
        $region52: #{tpu_custom_call.1} parent=23 // pred_fallthru
          _
        // Predicated region
        $region53: #{tpu_custom_call.1} parent=23 // pred_check
          %p541 = pneg %p239
        $region54: #{tpu_custom_call.1} parent=23 // pred_check_branch
          %543 = sbr.rel (%p541) target = $region56
        $region55: #{tpu_custom_call.1} parent=23 // pred_region
          %p544 = scmp.lt.s32.totalorder %s33, 1
          %s545 = scalar_select %p544, %s33, 1
          %s546 = scalar_lea.vmem %s7, %s545
        $region56: #{tpu_custom_call.1} parent=23 // pred_fallthru
          _
        // Predicated region
        $region57: #{tpu_custom_call.1} parent=23 // pred_check
          %p547 = pneg %p265
        $region58: #{tpu_custom_call.1} parent=23 // pred_check_branch
          %549 = sbr.rel (%p547) target = $region60
        $region59: #{tpu_custom_call.1} parent=23 // pred_region
          %p550 = scmp.lt.s32.totalorder %s33, 1
          %s551 = scalar_select %p550, %s33, 1
          %s552 = smul.addr %s551, 4
          %s553 = smul.addr %s552, 4
          %s554 = scalar_lea.vmem %s8, %s553
        $region60: #{tpu_custom_call.1} parent=23 // pred_fallthru
          _
        // Predicated region
        $region61: #{tpu_custom_call.1} parent=23 // pred_check
          %p555 = pneg %p291
        $region62: #{tpu_custom_call.1} parent=23 // pred_check_branch
          %557 = sbr.rel (%p555) target = $region64
        $region63: #{tpu_custom_call.1} parent=23 // pred_region
          %p558 = scmp.lt.s32.totalorder %s33, 1
          %s559 = scalar_select %p558, %s33, 1
          %s560 = scalar_lea.vmem %s9, %s559
        $region64: #{tpu_custom_call.1} parent=23 // pred_fallthru
          _
        // Predicated region
        $region65: #{tpu_custom_call.1} parent=23 // pred_check
          %p561 = pneg %p317
        $region66: #{tpu_custom_call.1} parent=23 // pred_check_branch
          %563 = sbr.rel (%p561) target = $region68
        $region67: #{tpu_custom_call.1} parent=23 // pred_region
          %p564 = scmp.lt.s32.totalorder %s33, 1
          %s565 = scalar_select %p564, %s33, 1
          %s566 = smul.addr %s565, 8
          %s567 = smul.addr %s566, 4
          %s568 = scalar_lea.vmem %s10, %s567
        $region68: #{tpu_custom_call.1} parent=23 // pred_fallthru
          _
        // Predicated region
        $region69: #{tpu_custom_call.1} parent=23 // pred_check
          %p569 = pneg %p343
        $region70: #{tpu_custom_call.1} parent=23 // pred_check_branch
          %571 = sbr.rel (%p569) target = $region72
        $region71: #{tpu_custom_call.1} parent=23 // pred_region
          %p572 = scmp.lt.s32.totalorder %s33, 1
          %s573 = scalar_select %p572, %s33, 1
          %s574 = scalar_lea.vmem %s11, %s573
        $region72: #{tpu_custom_call.1} parent=23 // pred_fallthru
          _
        // Predicated region
        $region73: #{tpu_custom_call.1} parent=23 // pred_check
          %p575 = pneg %p369
        $region74: #{tpu_custom_call.1} parent=23 // pred_check_branch
          %577 = sbr.rel (%p575) target = $region76
        $region75: #{tpu_custom_call.1} parent=23 // pred_region
          %p578 = scmp.lt.s32.totalorder %s33, 1
          %s579 = scalar_select %p578, %s33, 1
          %s580 = scalar_lea.vmem %s12, %s579
        $region76: #{tpu_custom_call.1} parent=23 // pred_fallthru
          _
        // Predicated region
        $region77: #{tpu_custom_call.1} parent=23 // pred_check
          %p581 = pneg %p395
        $region78: #{tpu_custom_call.1} parent=23 // pred_check_branch
          %583 = sbr.rel (%p581) target = $region80
        $region79: #{tpu_custom_call.1} parent=23 // pred_region
          %p584 = scmp.lt.s32.totalorder %s33, 1
          %s585 = scalar_select %p584, %s33, 1
          %s586 = scalar_lea.vmem %s13, %s585
        $region80: #{tpu_custom_call.1} parent=23 // pred_fallthru
          _
      $region24: #{tpu_custom_call.1} parent=5 // pred_fallthru
        _
      %p587 = scmp.le.s32.totalorder 1, %s25
      %p588 = scmp.lt.s32.totalorder %s25, 5
      %p589 = pnand %p587, %p588
      %p590 = pneg %p589
      // Predicated region
      $region81: #{tpu_custom_call.1} parent=5 // pred_check
        _
      $region82: #{tpu_custom_call.1} parent=5 // pred_check_branch
        %592 = sbr.rel (%p589) target = $region84
      $region83: #{tpu_custom_call.1} parent=5 // pred_region
        %s593 = ssub.s32 %s25, 1
        %p594 = scmp.lt.s32.totalorder %s34, 1
        %s595 = scalar_select %p594, %s34, 1
        %s596 = smul.addr %s595, 8
        %s597 = scalar_lea.vmem %s0, %s596
        %p598 = pneg %p63
        %p599 = pneg %p60
        %p600 = scmp.lt.s32.totalorder %s34, 1
        %s601 = scalar_select %p600, %s34, 1
        %s602 = scalar_lea.vmem %s1, %s601
        %p603 = pneg %p89
        %p604 = pneg %p86
        %p605 = scmp.lt.s32.totalorder %s35, 1
        %s606 = scalar_select %p605, %s35, 1
        %s607 = smul.addr %s606, 4
        %s608 = smul.addr %s607, 4
        %s609 = scalar_lea.vmem %s2, %s608
        %p610 = pneg %p115
        %p611 = pneg %p112
        %p612 = scmp.lt.s32.totalorder %s35, 1
        %s613 = scalar_select %p612, %s35, 1
        %s614 = scalar_lea.vmem %s3, %s613
        %p615 = pneg %p141
        %p616 = pneg %p138
        %p617 = scmp.lt.s32.totalorder %s35, 1
        %s618 = scalar_select %p617, %s35, 1
        %s619 = smul.addr %s618, 4
        %s620 = smul.addr %s619, 4
        %s621 = scalar_lea.vmem %s4, %s620
        %p622 = pneg %p167
        %p623 = pneg %p164
        %p624 = scmp.lt.s32.totalorder %s35, 1
        %s625 = scalar_select %p624, %s35, 1
        %s626 = scalar_lea.vmem %s5, %s625
        %p627 = pneg %p193
        %p628 = pneg %p190
        %p629 = scmp.lt.s32.totalorder %s35, 1
        %s630 = scalar_select %p629, %s35, 1
        %s631 = scalar_lea.vmem %s6, %s630
        %p632 = pneg %p219
        %p633 = pneg %p216
        %p634 = scmp.lt.s32.totalorder %s35, 1
        %s635 = scalar_select %p634, %s35, 1
        %s636 = scalar_lea.vmem %s7, %s635
        %p637 = pneg %p245
        %p638 = pneg %p242
        %p639 = scmp.lt.s32.totalorder %s35, 1
        %s640 = scalar_select %p639, %s35, 1
        %s641 = smul.addr %s640, 4
        %s642 = smul.addr %s641, 4
        %s643 = scalar_lea.vmem %s8, %s642
        %p644 = pneg %p271
        %p645 = pneg %p268
        %p646 = scmp.lt.s32.totalorder %s35, 1
        %s647 = scalar_select %p646, %s35, 1
        %s648 = scalar_lea.vmem %s9, %s647
        %p649 = pneg %p297
        %p650 = pneg %p294
        %p651 = scmp.lt.s32.totalorder %s35, 1
        %s652 = scalar_select %p651, %s35, 1
        %s653 = smul.addr %s652, 8
        %s654 = smul.addr %s653, 4
        %s655 = scalar_lea.vmem %s10, %s654
        %p656 = pneg %p323
        %p657 = pneg %p320
        %p658 = scmp.lt.s32.totalorder %s35, 1
        %s659 = scalar_select %p658, %s35, 1
        %s660 = scalar_lea.vmem %s11, %s659
        %p661 = pneg %p349
        %p662 = pneg %p346
        %p663 = scmp.lt.s32.totalorder %s35, 1
        %s664 = scalar_select %p663, %s35, 1
        %s665 = scalar_lea.vmem %s12, %s664
        %p666 = pneg %p375
        %p667 = pneg %p372
        %p668 = scmp.lt.s32.totalorder %s35, 1
        %s669 = scalar_select %p668, %s35, 1
        %s670 = scalar_lea.vmem %s13, %s669
        %p671 = pneg %p401
        %p672 = pneg %p398
        %p673 = pneg %p422
        %p674 = pneg %p419
        %p675 = pneg %p443
        %p676 = pneg %p440
        %p677 = pneg %p469
        %p678 = pneg %p466
        %s679 = sand.u32 %s456, 1
        %s680 = scalar_lea.sflag [#allocation5], %s679
        %s681 = sand.u32 %s456, 1
        %s682 = scalar_lea.vmem [#allocation4], %s681
        %p683 = scmp.lt.s32.totalorder %s34, 1
        %s684 = scalar_select %p683, %s34, 1
        %s685 = smul.addr %s684, 8
        %s686 = scalar_lea.vmem %s0, %s685
        %p687 = scmp.lt.s32.totalorder %s34, 1
        %s688 = scalar_select %p687, %s34, 1
        %s689 = scalar_lea.vmem %s1, %s688
        %p690 = scmp.lt.s32.totalorder %s35, 1
        %s691 = scalar_select %p690, %s35, 1
        %s692 = smul.addr %s691, 4
        %s693 = smul.addr %s692, 4
        %s694 = scalar_lea.vmem %s2, %s693
        %p695 = scmp.lt.s32.totalorder %s35, 1
        %s696 = scalar_select %p695, %s35, 1
        %s697 = scalar_lea.vmem %s3, %s696
        %p698 = scmp.lt.s32.totalorder %s35, 1
        %s699 = scalar_select %p698, %s35, 1
        %s700 = smul.addr %s699, 4
        %s701 = smul.addr %s700, 4
        %s702 = scalar_lea.vmem %s4, %s701
        %p703 = scmp.lt.s32.totalorder %s35, 1
        %s704 = scalar_select %p703, %s35, 1
        %s705 = scalar_lea.vmem %s5, %s704
        %p706 = scmp.lt.s32.totalorder %s35, 1
        %s707 = scalar_select %p706, %s35, 1
        %s708 = scalar_lea.vmem %s6, %s707
        %p709 = scmp.lt.s32.totalorder %s35, 1
        %s710 = scalar_select %p709, %s35, 1
        %s711 = scalar_lea.vmem %s7, %s710
        %p712 = scmp.lt.s32.totalorder %s35, 1
        %s713 = scalar_select %p712, %s35, 1
        %s714 = smul.addr %s713, 4
        %s715 = smul.addr %s714, 4
        %s716 = scalar_lea.vmem %s8, %s715
        %p717 = scmp.lt.s32.totalorder %s35, 1
        %s718 = scalar_select %p717, %s35, 1
        %s719 = scalar_lea.vmem %s9, %s718
        %p720 = scmp.lt.s32.totalorder %s35, 1
        %s721 = scalar_select %p720, %s35, 1
        %s722 = smul.addr %s721, 8
        %s723 = smul.addr %s722, 4
        %s724 = scalar_lea.vmem %s10, %s723
        %p725 = scmp.lt.s32.totalorder %s35, 1
        %s726 = scalar_select %p725, %s35, 1
        %s727 = scalar_lea.vmem %s11, %s726
        %p728 = scmp.lt.s32.totalorder %s35, 1
        %s729 = scalar_select %p728, %s35, 1
        %s730 = scalar_lea.vmem %s12, %s729
        %p731 = scmp.lt.s32.totalorder %s35, 1
        %s732 = scalar_select %p731, %s35, 1
        %s733 = scalar_lea.vmem %s13, %s732
        %p735 = scmp.eq.s32.totalorder %s35, 0
        // Predicated region
        $region85: #{tpu_custom_call.1} parent=83 // pred_check
          %p736 = pneg %p735
        $region86: #{tpu_custom_call.1} parent=83 // pred_check_branch
          %738 = sbr.rel (%p736) target = $region88
        $region87: #{tpu_custom_call.1} parent=83 // pred_region
          %v739 = vld [vmem:[%s686] sm:$0xff]
          %vm740 = vcmask 261120
          %741 = vst.msk [vmem:[#allocation2] sm:$0xff] %vm740, %v739
        $region88: #{tpu_custom_call.1} parent=83 // pred_fallthru
          _
        %v742 = vld [vmem:[#allocation2] sm:$0xff]
        %v743 = vpack.c.bf16 %v742, %v742
        %v744 = vld [vmem:[%s694] sm:$0xf]
        %v745 = vld [vmem:[%s694 + $0x4] sm:$0xf]
        %v746 = vld [vmem:[%s694 + $0x8] sm:$0xf]
        %v747 = vld [vmem:[%s694 + $0xc] sm:$0xf]
        %v748 = vld [vmem:[%s697] sm:$0x1]
        %v750 = vlaneseq
        %v751 = vshrl.u32 %v750, 7
        %v752 = vsub.s32 0, %v751
        %v753 = vrot.slane %v748, %v752
        %v759 = vunpack.c.l.b16 %v744
        %v760 = vunpack.c.l.b16 %v745
        %v761 = vunpack.c.l.b16 %v746
        %v762 = vunpack.c.l.b16 %v747
        %v763 = vpack.c.b16 %v760, %v759
        %v764 = vpack.c.b16 %v762, %v761
        %vm767 = vcmask 261120
        %v769 = vsel %vm767, %v743, 0
        %771 = vmatprep.subr.bf16.mxu0 0
        %772 = vmatpush1.bf16.msra.mxu0 %v763
        %773 = vmatprep.subr.bf16.mxu0 0
        %774 = vmatpush1.bf16.msra.mxu0 %v764
        %775 = vmatprep.subr.bf16.mxu0 0
        %776 = vmatpush1.bf16.msra.mxu0 0
        %777 = vmatprep.subr.bf16.mxu0 0
        %778 = vmatpush1.bf16.msra.mxu0 0
        %779 = vmatprep.subr.bf16.mxu0 0
        %780 = vmatpush1.bf16.msra.mxu0 0
        %781 = vmatprep.subr.bf16.mxu0 0
        %782 = vmatpush1.bf16.msra.mxu0 0
        %783 = vmatprep.subr.bf16.mxu0 0
        %784 = vmatpush1.bf16.msra.mxu0 0
        %785 = vmatprep.subr.bf16.mxu0 0
        %786 = vmatpush1.bf16.msra.mxu0 0
        %787 = vmatprep.subr.bf16.mxu0 0
        %788 = vmatpush1.bf16.msra.mxu0 0
        %789 = vmatprep.subr.bf16.mxu0 0
        %790 = vmatpush1.bf16.msra.mxu0 0
        %791 = vmatprep.subr.bf16.mxu0 0
        %792 = vmatpush1.bf16.msra.mxu0 0
        %793 = vmatprep.subr.bf16.mxu0 0
        %794 = vmatpush1.bf16.msra.mxu0 0
        %795 = vmatprep.subr.bf16.mxu0 0
        %796 = vmatpush1.bf16.msra.mxu0 0
        %797 = vmatprep.subr.bf16.mxu0 0
        %798 = vmatpush1.bf16.msra.mxu0 0
        %799 = vmatprep.subr.bf16.mxu0 0
        %800 = vmatpush1.bf16.msra.mxu0 0
        %801 = vmatprep.subr.bf16.mxu0 0
        %802 = vmatpush1.bf16.msra.mxu0 0
        %803 = vmatprep.mubr.bf16.mxu0 0
        %804 = vmatmul.mubr.bf16.gmra.mrb[0].mxu0 %v769
        %v805 = vpop.f32.mrb[0].mxu0
        %v806 = vadd.f32 %v753, %v805
        %v807 = vpop.f32.mrb[0].mxu0
        %v808 = vpop.f32.mrb[0].mxu0
        %v809 = vpop.f32.mrb[0].mxu0
        %810 = vdwg.mxu0
        %v811 = vld [vmem:[%s689] sm:$0x1]
        %v812 = vpack.c.bf16 %v806, %v806
        %814 = vrot.lane.b32.xlu0 %v812, 96
        %v815 = vpop.permute.xlu0 %814
        %vm816 = vcmask 64512
        %v818 = vsel %vm816, %v812, 0
        %v821 = vsel %vm816, %v815, 0
        %823 = vmatprep.subr.bf16.mxu0 0
        %824 = vmatpush1.bf16.xpose.msra.mxu0 %v821
        %825 = vmatprep.subr.bf16.mxu0 0
        %826 = vmatpush1.bf16.xpose.msra.mxu0 0
        %827 = vmatprep.subr.bf16.mxu0 0
        %828 = vmatpush1.bf16.xpose.msra.mxu0 0
        %829 = vmatprep.subr.bf16.mxu0 0
        %830 = vmatpush1.bf16.xpose.msra.mxu0 0
        %831 = vmatprep.subr.bf16.mxu0 0
        %832 = vmatpush1.bf16.xpose.msra.mxu0 0
        %833 = vmatprep.subr.bf16.mxu0 0
        %834 = vmatpush1.bf16.xpose.msra.mxu0 0
        %835 = vmatprep.subr.bf16.mxu0 0
        %836 = vmatpush1.bf16.xpose.msra.mxu0 0
        %837 = vmatprep.subr.bf16.mxu0 0
        %838 = vmatpush1.bf16.xpose.msra.mxu0 0
        %839 = vmatprep.subr.bf16.mxu0 0
        %840 = vmatpush1.bf16.xpose.msra.mxu0 0
        %841 = vmatprep.subr.bf16.mxu0 0
        %842 = vmatpush1.bf16.xpose.msra.mxu0 0
        %843 = vmatprep.subr.bf16.mxu0 0
        %844 = vmatpush1.bf16.xpose.msra.mxu0 0
        %845 = vmatprep.subr.bf16.mxu0 0
        %846 = vmatpush1.bf16.xpose.msra.mxu0 0
        %847 = vmatprep.subr.bf16.mxu0 0
        %848 = vmatpush1.bf16.xpose.msra.mxu0 0
        %849 = vmatprep.subr.bf16.mxu0 0
        %850 = vmatpush1.bf16.xpose.msra.mxu0 0
        %851 = vmatprep.subr.bf16.mxu0 0
        %852 = vmatpush1.bf16.xpose.msra.mxu0 0
        %853 = vmatprep.subr.bf16.mxu0 0
        %854 = vmatpush1.bf16.xpose.msra.mxu0 0
        %855 = vmatprep.mubr.bf16.mxu0 0
        %856 = vmatmul.mubr.bf16.gmra.mrb[0].mxu0 %v818
        %v857 = vpop.f32.mrb[0].mxu0
        %v858 = vadd.f32 0.0, %v857
        %v859 = vpop.f32.mrb[0].mxu0
        %v860 = vpop.f32.mrb[0].mxu0
        %v861 = vpop.f32.mrb[0].mxu0
        %862 = vdwg.mxu0
        %v863 = vmul.f32 %v858, 0.35355338
        %v865 = vlaneseq
        %v866 = vshrl.u32 %v865, 7
        %v867 = vsub.s32 0, %v866
        %v868 = vrot.slane %v811, %v867
        %v870 = vadd.f32 %v863, %v868
        %v871 = vsel %vm816, %v870, -inf
        %872 = vmax.xlane.f32.xlu0 %v871
        %v873 = vpop.xlane.xlu0 %872
        %v874 = vsub.f32 %v870, %v873
        %v875 = vmul.f32 %v874, 1.442695
        %v876 = vpow.pop %v875
        %v877 = vsel %vm816, %v876, 0.0
        %878 = vadd.xlane.f32.xlu0 %v877
        %v879 = vpop.xlane.xlu0 %878
        %v880 = vrcp.pop %v879
        %v881 = vmul.f32 %v876, %v880
        %v882 = vpack.c.bf16 %v881, %v881
        %883 = vrot.lane.b32.xlu0 %v812, 64
        %v884 = vpop.permute.xlu0 %883
        %v886 = vsel %vm816, %v882, 0
        %vm888 = vcmask 1043456
        %v890 = vsel %vm888, %v884, 0
        %892 = vmatprep.subr.bf16.mxu0 0
        %893 = vmatpush1.bf16.msra.mxu0 %v890
        %894 = vmatprep.subr.bf16.mxu0 0
        %895 = vmatpush1.bf16.msra.mxu0 0
        %896 = vmatprep.subr.bf16.mxu0 0
        %897 = vmatpush1.bf16.msra.mxu0 0
        %898 = vmatprep.subr.bf16.mxu0 0
        %899 = vmatpush1.bf16.msra.mxu0 0
        %900 = vmatprep.subr.bf16.mxu0 0
        %901 = vmatpush1.bf16.msra.mxu0 0
        %902 = vmatprep.subr.bf16.mxu0 0
        %903 = vmatpush1.bf16.msra.mxu0 0
        %904 = vmatprep.subr.bf16.mxu0 0
        %905 = vmatpush1.bf16.msra.mxu0 0
        %906 = vmatprep.subr.bf16.mxu0 0
        %907 = vmatpush1.bf16.msra.mxu0 0
        %908 = vmatprep.subr.bf16.mxu0 0
        %909 = vmatpush1.bf16.msra.mxu0 0
        %910 = vmatprep.subr.bf16.mxu0 0
        %911 = vmatpush1.bf16.msra.mxu0 0
        %912 = vmatprep.subr.bf16.mxu0 0
        %913 = vmatpush1.bf16.msra.mxu0 0
        %914 = vmatprep.subr.bf16.mxu0 0
        %915 = vmatpush1.bf16.msra.mxu0 0
        %916 = vmatprep.subr.bf16.mxu0 0
        %917 = vmatpush1.bf16.msra.mxu0 0
        %918 = vmatprep.subr.bf16.mxu0 0
        %919 = vmatpush1.bf16.msra.mxu0 0
        %920 = vmatprep.subr.bf16.mxu0 0
        %921 = vmatpush1.bf16.msra.mxu0 0
        %922 = vmatprep.subr.bf16.mxu0 0
        %923 = vmatpush1.bf16.msra.mxu0 0
        %924 = vmatprep.mubr.bf16.mxu0 0
        %925 = vmatmul.mubr.bf16.gmra.mrb[0].mxu0 %v886
        %v926 = vpop.f32.mrb[0].mxu0
        %v927 = vadd.f32 0.0, %v926
        %v928 = vpop.f32.mrb[0].mxu0
        %v929 = vpop.f32.mrb[0].mxu0
        %v930 = vpop.f32.mrb[0].mxu0
        %931 = vdwg.mxu0
        %932 = vst.msk [vmem:[#allocation3] sm:$0xff] %vm816, %v927
        %933 = vrot.lane.b32.xlu0 %v812, 120
        %v934 = vpop.permute.xlu0 %933
        %935 = vrot.lane.b32.xlu0 %v812, 88
        %v936 = vpop.permute.xlu0 %935
        %v938 = vsel %vm816, %v934, 0
        %v941 = vsel %vm816, %v936, 0
        %943 = vmatprep.subr.bf16.mxu0 0
        %944 = vmatpush1.bf16.xpose.msra.mxu0 %v941
        %945 = vmatprep.subr.bf16.mxu0 0
        %946 = vmatpush1.bf16.xpose.msra.mxu0 0
        %947 = vmatprep.subr.bf16.mxu0 0
        %948 = vmatpush1.bf16.xpose.msra.mxu0 0
        %949 = vmatprep.subr.bf16.mxu0 0
        %950 = vmatpush1.bf16.xpose.msra.mxu0 0
        %951 = vmatprep.subr.bf16.mxu0 0
        %952 = vmatpush1.bf16.xpose.msra.mxu0 0
        %953 = vmatprep.subr.bf16.mxu0 0
        %954 = vmatpush1.bf16.xpose.msra.mxu0 0
        %955 = vmatprep.subr.bf16.mxu0 0
        %956 = vmatpush1.bf16.xpose.msra.mxu0 0
        %957 = vmatprep.subr.bf16.mxu0 0
        %958 = vmatpush1.bf16.xpose.msra.mxu0 0
        %959 = vmatprep.subr.bf16.mxu0 0
        %960 = vmatpush1.bf16.xpose.msra.mxu0 0
        %961 = vmatprep.subr.bf16.mxu0 0
        %962 = vmatpush1.bf16.xpose.msra.mxu0 0
        %963 = vmatprep.subr.bf16.mxu0 0
        %964 = vmatpush1.bf16.xpose.msra.mxu0 0
        %965 = vmatprep.subr.bf16.mxu0 0
        %966 = vmatpush1.bf16.xpose.msra.mxu0 0
        %967 = vmatprep.subr.bf16.mxu0 0
        %968 = vmatpush1.bf16.xpose.msra.mxu0 0
        %969 = vmatprep.subr.bf16.mxu0 0
        %970 = vmatpush1.bf16.xpose.msra.mxu0 0
        %971 = vmatprep.subr.bf16.mxu0 0
        %972 = vmatpush1.bf16.xpose.msra.mxu0 0
        %973 = vmatprep.subr.bf16.mxu0 0
        %974 = vmatpush1.bf16.xpose.msra.mxu0 0
        %975 = vmatprep.mubr.bf16.mxu0 0
        %976 = vmatmul.mubr.bf16.gmra.mrb[0].mxu0 %v938
        %v977 = vpop.f32.mrb[0].mxu0
        %v978 = vadd.f32 0.0, %v977
        %v979 = vpop.f32.mrb[0].mxu0
        %v980 = vpop.f32.mrb[0].mxu0
        %v981 = vpop.f32.mrb[0].mxu0
        %982 = vdwg.mxu0
        %v983 = vmul.f32 %v978, 0.35355338
        %v984 = vadd.f32 %v983, %v868
        %v985 = vsel %vm816, %v984, -inf
        %986 = vmax.xlane.f32.xlu0 %v985
        %v987 = vpop.xlane.xlu0 %986
        %v988 = vsub.f32 %v984, %v987
        %v989 = vmul.f32 %v988, 1.442695
        %v990 = vpow.pop %v989
        %v991 = vsel %vm816, %v990, 0.0
        %992 = vadd.xlane.f32.xlu0 %v991
        %v993 = vpop.xlane.xlu0 %992
        %v994 = vrcp.pop %v993
        %v995 = vmul.f32 %v990, %v994
        %v996 = vpack.c.bf16 %v995, %v995
        %997 = vrot.lane.b32.xlu0 %v812, 56
        %v998 = vpop.permute.xlu0 %997
        %v1000 = vsel %vm816, %v996, 0
        %v1003 = vsel %vm888, %v998, 0
        %1005 = vmatprep.subr.bf16.mxu0 0
        %1006 = vmatpush1.bf16.msra.mxu0 %v1003
        %1007 = vmatprep.subr.bf16.mxu0 0
        %1008 = vmatpush1.bf16.msra.mxu0 0
        %1009 = vmatprep.subr.bf16.mxu0 0
        %1010 = vmatpush1.bf16.msra.mxu0 0
        %1011 = vmatprep.subr.bf16.mxu0 0
        %1012 = vmatpush1.bf16.msra.mxu0 0
        %1013 = vmatprep.subr.bf16.mxu0 0
        %1014 = vmatpush1.bf16.msra.mxu0 0
        %1015 = vmatprep.subr.bf16.mxu0 0
        %1016 = vmatpush1.bf16.msra.mxu0 0
        %1017 = vmatprep.subr.bf16.mxu0 0
        %1018 = vmatpush1.bf16.msra.mxu0 0
        %1019 = vmatprep.subr.bf16.mxu0 0
        %1020 = vmatpush1.bf16.msra.mxu0 0
        %1021 = vmatprep.subr.bf16.mxu0 0
        %1022 = vmatpush1.bf16.msra.mxu0 0
        %1023 = vmatprep.subr.bf16.mxu0 0
        %1024 = vmatpush1.bf16.msra.mxu0 0
        %1025 = vmatprep.subr.bf16.mxu0 0
        %1026 = vmatpush1.bf16.msra.mxu0 0
        %1027 = vmatprep.subr.bf16.mxu0 0
        %1028 = vmatpush1.bf16.msra.mxu0 0
        %1029 = vmatprep.subr.bf16.mxu0 0
        %1030 = vmatpush1.bf16.msra.mxu0 0
        %1031 = vmatprep.subr.bf16.mxu0 0
        %1032 = vmatpush1.bf16.msra.mxu0 0
        %1033 = vmatprep.subr.bf16.mxu0 0
        %1034 = vmatpush1.bf16.msra.mxu0 0
        %1035 = vmatprep.subr.bf16.mxu0 0
        %1036 = vmatpush1.bf16.msra.mxu0 0
        %1037 = vmatprep.mubr.bf16.mxu0 0
        %1038 = vmatmul.mubr.bf16.gmra.mrb[0].mxu0 %v1000
        %v1039 = vpop.f32.mrb[0].mxu0
        %v1040 = vadd.f32 0.0, %v1039
        %v1041 = vpop.f32.mrb[0].mxu0
        %v1042 = vpop.f32.mrb[0].mxu0
        %v1043 = vpop.f32.mrb[0].mxu0
        %1044 = vdwg.mxu0
        %1046 = vrot.lane.b32.xlu0 %v1040, 8
        %v1047 = vpop.permute.xlu0 %1046
        %vm1049 = vcmask 130112
        %1050 = vst.msk [vmem:[#allocation3] sm:$0xff] %vm1049, %v1047
        %1051 = vrot.lane.b32.xlu0 %v812, 112
        %v1052 = vpop.permute.xlu0 %1051
        %1053 = vrot.lane.b32.xlu0 %v812, 80
        %v1054 = vpop.permute.xlu0 %1053
        %v1056 = vsel %vm816, %v1052, 0
        %v1059 = vsel %vm816, %v1054, 0
        %1061 = vmatprep.subr.bf16.mxu0 0
        %1062 = vmatpush1.bf16.xpose.msra.mxu0 %v1059
        %1063 = vmatprep.subr.bf16.mxu0 0
        %1064 = vmatpush1.bf16.xpose.msra.mxu0 0
        %1065 = vmatprep.subr.bf16.mxu0 0
        %1066 = vmatpush1.bf16.xpose.msra.mxu0 0
        %1067 = vmatprep.subr.bf16.mxu0 0
        %1068 = vmatpush1.bf16.xpose.msra.mxu0 0
        %1069 = vmatprep.subr.bf16.mxu0 0
        %1070 = vmatpush1.bf16.xpose.msra.mxu0 0
        %1071 = vmatprep.subr.bf16.mxu0 0
        %1072 = vmatpush1.bf16.xpose.msra.mxu0 0
        %1073 = vmatprep.subr.bf16.mxu0 0
        %1074 = vmatpush1.bf16.xpose.msra.mxu0 0
        %1075 = vmatprep.subr.bf16.mxu0 0
        %1076 = vmatpush1.bf16.xpose.msra.mxu0 0
        %1077 = vmatprep.subr.bf16.mxu0 0
        %1078 = vmatpush1.bf16.xpose.msra.mxu0 0
        %1079 = vmatprep.subr.bf16.mxu0 0
        %1080 = vmatpush1.bf16.xpose.msra.mxu0 0
        %1081 = vmatprep.subr.bf16.mxu0 0
        %1082 = vmatpush1.bf16.xpose.msra.mxu0 0
        %1083 = vmatprep.subr.bf16.mxu0 0
        %1084 = vmatpush1.bf16.xpose.msra.mxu0 0
        %1085 = vmatprep.subr.bf16.mxu0 0
        %1086 = vmatpush1.bf16.xpose.msra.mxu0 0
        %1087 = vmatprep.subr.bf16.mxu0 0
        %1088 = vmatpush1.bf16.xpose.msra.mxu0 0
        %1089 = vmatprep.subr.bf16.mxu0 0
        %1090 = vmatpush1.bf16.xpose.msra.mxu0 0
        %1091 = vmatprep.subr.bf16.mxu0 0
        %1092 = vmatpush1.bf16.xpose.msra.mxu0 0
        %1093 = vmatprep.mubr.bf16.mxu0 0
        %1094 = vmatmul.mubr.bf16.gmra.mrb[0].mxu0 %v1056
        %v1095 = vpop.f32.mrb[0].mxu0
        %v1096 = vadd.f32 0.0, %v1095
        %v1097 = vpop.f32.mrb[0].mxu0
        %v1098 = vpop.f32.mrb[0].mxu0
        %v1099 = vpop.f32.mrb[0].mxu0
        %1100 = vdwg.mxu0
        %v1101 = vmul.f32 %v1096, 0.35355338
        %v1102 = vadd.f32 %v1101, %v868
        %v1103 = vsel %vm816, %v1102, -inf
        %1104 = vmax.xlane.f32.xlu0 %v1103
        %v1105 = vpop.xlane.xlu0 %1104
        %v1106 = vsub.f32 %v1102, %v1105
        %v1107 = vmul.f32 %v1106, 1.442695
        %v1108 = vpow.pop %v1107
        %v1109 = vsel %vm816, %v1108, 0.0
        %1110 = vadd.xlane.f32.xlu0 %v1109
        %v1111 = vpop.xlane.xlu0 %1110
        %v1112 = vrcp.pop %v1111
        %v1113 = vmul.f32 %v1108, %v1112
        %v1114 = vpack.c.bf16 %v1113, %v1113
        %1115 = vrot.lane.b32.xlu0 %v812, 48
        %v1116 = vpop.permute.xlu0 %1115
        %v1118 = vsel %vm816, %v1114, 0
        %v1121 = vsel %vm888, %v1116, 0
        %1123 = vmatprep.subr.bf16.mxu0 0
        %1124 = vmatpush1.bf16.msra.mxu0 %v1121
        %1125 = vmatprep.subr.bf16.mxu0 0
        %1126 = vmatpush1.bf16.msra.mxu0 0
        %1127 = vmatprep.subr.bf16.mxu0 0
        %1128 = vmatpush1.bf16.msra.mxu0 0
        %1129 = vmatprep.subr.bf16.mxu0 0
        %1130 = vmatpush1.bf16.msra.mxu0 0
        %1131 = vmatprep.subr.bf16.mxu0 0
        %1132 = vmatpush1.bf16.msra.mxu0 0
        %1133 = vmatprep.subr.bf16.mxu0 0
        %1134 = vmatpush1.bf16.msra.mxu0 0
        %1135 = vmatprep.subr.bf16.mxu0 0
        %1136 = vmatpush1.bf16.msra.mxu0 0
        %1137 = vmatprep.subr.bf16.mxu0 0
        %1138 = vmatpush1.bf16.msra.mxu0 0
        %1139 = vmatprep.subr.bf16.mxu0 0
        %1140 = vmatpush1.bf16.msra.mxu0 0
        %1141 = vmatprep.subr.bf16.mxu0 0
        %1142 = vmatpush1.bf16.msra.mxu0 0
        %1143 = vmatprep.subr.bf16.mxu0 0
        %1144 = vmatpush1.bf16.msra.mxu0 0
        %1145 = vmatprep.subr.bf16.mxu0 0
        %1146 = vmatpush1.bf16.msra.mxu0 0
        %1147 = vmatprep.subr.bf16.mxu0 0
        %1148 = vmatpush1.bf16.msra.mxu0 0
        %1149 = vmatprep.subr.bf16.mxu0 0
        %1150 = vmatpush1.bf16.msra.mxu0 0
        %1151 = vmatprep.subr.bf16.mxu0 0
        %1152 = vmatpush1.bf16.msra.mxu0 0
        %1153 = vmatprep.subr.bf16.mxu0 0
        %1154 = vmatpush1.bf16.msra.mxu0 0
        %1155 = vmatprep.mubr.bf16.mxu0 0
        %1156 = vmatmul.mubr.bf16.gmra.mrb[0].mxu0 %v1118
        %v1157 = vpop.f32.mrb[0].mxu0
        %v1158 = vadd.f32 0.0, %v1157
        %v1159 = vpop.f32.mrb[0].mxu0
        %v1160 = vpop.f32.mrb[0].mxu0
        %v1161 = vpop.f32.mrb[0].mxu0
        %1162 = vdwg.mxu0
        %1164 = vrot.lane.b32.xlu0 %v1158, 16
        %v1165 = vpop.permute.xlu0 %1164
        %vm1167 = vcmask 195712
        %1168 = vst.msk [vmem:[#allocation3] sm:$0xff] %vm1167, %v1165
        %1169 = vrot.lane.b32.xlu0 %v812, 104
        %v1170 = vpop.permute.xlu0 %1169
        %1171 = vrot.lane.b32.xlu0 %v812, 72
        %v1172 = vpop.permute.xlu0 %1171
        %v1174 = vsel %vm816, %v1170, 0
        %v1177 = vsel %vm816, %v1172, 0
        %1179 = vmatprep.subr.bf16.mxu0 0
        %1180 = vmatpush1.bf16.xpose.msra.mxu0 %v1177
        %1181 = vmatprep.subr.bf16.mxu0 0
        %1182 = vmatpush1.bf16.xpose.msra.mxu0 0
        %1183 = vmatprep.subr.bf16.mxu0 0
        %1184 = vmatpush1.bf16.xpose.msra.mxu0 0
        %1185 = vmatprep.subr.bf16.mxu0 0
        %1186 = vmatpush1.bf16.xpose.msra.mxu0 0
        %1187 = vmatprep.subr.bf16.mxu0 0
        %1188 = vmatpush1.bf16.xpose.msra.mxu0 0
        %1189 = vmatprep.subr.bf16.mxu0 0
        %1190 = vmatpush1.bf16.xpose.msra.mxu0 0
        %1191 = vmatprep.subr.bf16.mxu0 0
        %1192 = vmatpush1.bf16.xpose.msra.mxu0 0
        %1193 = vmatprep.subr.bf16.mxu0 0
        %1194 = vmatpush1.bf16.xpose.msra.mxu0 0
        %1195 = vmatprep.subr.bf16.mxu0 0
        %1196 = vmatpush1.bf16.xpose.msra.mxu0 0
        %1197 = vmatprep.subr.bf16.mxu0 0
        %1198 = vmatpush1.bf16.xpose.msra.mxu0 0
        %1199 = vmatprep.subr.bf16.mxu0 0
        %1200 = vmatpush1.bf16.xpose.msra.mxu0 0
        %1201 = vmatprep.subr.bf16.mxu0 0
        %1202 = vmatpush1.bf16.xpose.msra.mxu0 0
        %1203 = vmatprep.subr.bf16.mxu0 0
        %1204 = vmatpush1.bf16.xpose.msra.mxu0 0
        %1205 = vmatprep.subr.bf16.mxu0 0
        %1206 = vmatpush1.bf16.xpose.msra.mxu0 0
        %1207 = vmatprep.subr.bf16.mxu0 0
        %1208 = vmatpush1.bf16.xpose.msra.mxu0 0
        %1209 = vmatprep.subr.bf16.mxu0 0
        %1210 = vmatpush1.bf16.xpose.msra.mxu0 0
        %1211 = vmatprep.mubr.bf16.mxu0 0
        %1212 = vmatmul.mubr.bf16.gmra.mrb[0].mxu0 %v1174
        %v1213 = vpop.f32.mrb[0].mxu0
        %v1214 = vadd.f32 0.0, %v1213
        %v1215 = vpop.f32.mrb[0].mxu0
        %v1216 = vpop.f32.mrb[0].mxu0
        %v1217 = vpop.f32.mrb[0].mxu0
        %1218 = vdwg.mxu0
        %v1219 = vmul.f32 %v1214, 0.35355338
        %v1220 = vadd.f32 %v1219, %v868
        %v1221 = vsel %vm816, %v1220, -inf
        %1222 = vmax.xlane.f32.xlu0 %v1221
        %v1223 = vpop.xlane.xlu0 %1222
        %v1224 = vsub.f32 %v1220, %v1223
        %v1225 = vmul.f32 %v1224, 1.442695
        %v1226 = vpow.pop %v1225
        %v1227 = vsel %vm816, %v1226, 0.0
        %1228 = vadd.xlane.f32.xlu0 %v1227
        %v1229 = vpop.xlane.xlu0 %1228
        %v1230 = vrcp.pop %v1229
        %v1231 = vmul.f32 %v1226, %v1230
        %v1232 = vpack.c.bf16 %v1231, %v1231
        %1233 = vrot.lane.b32.xlu0 %v812, 40
        %v1234 = vpop.permute.xlu0 %1233
        %v1236 = vsel %vm816, %v1232, 0
        %v1239 = vsel %vm888, %v1234, 0
        %1241 = vmatprep.subr.bf16.mxu0 0
        %1242 = vmatpush1.bf16.msra.mxu0 %v1239
        %1243 = vmatprep.subr.bf16.mxu0 0
        %1244 = vmatpush1.bf16.msra.mxu0 0
        %1245 = vmatprep.subr.bf16.mxu0 0
        %1246 = vmatpush1.bf16.msra.mxu0 0
        %1247 = vmatprep.subr.bf16.mxu0 0
        %1248 = vmatpush1.bf16.msra.mxu0 0
        %1249 = vmatprep.subr.bf16.mxu0 0
        %1250 = vmatpush1.bf16.msra.mxu0 0
        %1251 = vmatprep.subr.bf16.mxu0 0
        %1252 = vmatpush1.bf16.msra.mxu0 0
        %1253 = vmatprep.subr.bf16.mxu0 0
        %1254 = vmatpush1.bf16.msra.mxu0 0
        %1255 = vmatprep.subr.bf16.mxu0 0
        %1256 = vmatpush1.bf16.msra.mxu0 0
        %1257 = vmatprep.subr.bf16.mxu0 0
        %1258 = vmatpush1.bf16.msra.mxu0 0
        %1259 = vmatprep.subr.bf16.mxu0 0
        %1260 = vmatpush1.bf16.msra.mxu0 0
        %1261 = vmatprep.subr.bf16.mxu0 0
        %1262 = vmatpush1.bf16.msra.mxu0 0
        %1263 = vmatprep.subr.bf16.mxu0 0
        %1264 = vmatpush1.bf16.msra.mxu0 0
        %1265 = vmatprep.subr.bf16.mxu0 0
        %1266 = vmatpush1.bf16.msra.mxu0 0
        %1267 = vmatprep.subr.bf16.mxu0 0
        %1268 = vmatpush1.bf16.msra.mxu0 0
        %1269 = vmatprep.subr.bf16.mxu0 0
        %1270 = vmatpush1.bf16.msra.mxu0 0
        %1271 = vmatprep.subr.bf16.mxu0 0
        %1272 = vmatpush1.bf16.msra.mxu0 0
        %1273 = vmatprep.mubr.bf16.mxu0 0
        %1274 = vmatmul.mubr.bf16.gmra.mrb[0].mxu0 %v1236
        %v1275 = vpop.f32.mrb[0].mxu0
        %v1276 = vadd.f32 0.0, %v1275
        %v1277 = vpop.f32.mrb[0].mxu0
        %v1278 = vpop.f32.mrb[0].mxu0
        %v1279 = vpop.f32.mrb[0].mxu0
        %1280 = vdwg.mxu0
        %1282 = vrot.lane.b32.xlu0 %v1276, 24
        %v1283 = vpop.permute.xlu0 %1282
        %vm1285 = vcmask 261312
        %1286 = vst.msk [vmem:[#allocation3] sm:$0xff] %vm1285, %v1283
        %v1287 = vld [vmem:[#allocation3] sm:$0xff]
        %v1288 = vpack.c.bf16 %v1287, %v1287
        %v1289 = vld [vmem:[%s702] sm:$0xf]
        %v1290 = vld [vmem:[%s702 + $0x4] sm:$0xf]
        %v1291 = vld [vmem:[%s702 + $0x8] sm:$0xf]
        %v1292 = vld [vmem:[%s702 + $0xc] sm:$0xf]
        %v1293 = vld [vmem:[%s705] sm:$0x1]
        %v1295 = vlaneseq
        %v1296 = vshrl.u32 %v1295, 7
        %v1297 = vsub.s32 0, %v1296
        %v1298 = vrot.slane %v1293, %v1297
        %v1304 = vunpack.c.l.b16 %v1289
        %v1305 = vunpack.c.l.b16 %v1290
        %v1306 = vunpack.c.l.b16 %v1291
        %v1307 = vunpack.c.l.b16 %v1292
        %v1308 = vpack.c.b16 %v1305, %v1304
        %v1309 = vpack.c.b16 %v1307, %v1306
        %v1313 = vsel %vm767, %v1288, 0
        %1315 = vmatprep.subr.bf16.mxu0 0
        %1316 = vmatpush1.bf16.msra.mxu0 %v1308
        %1317 = vmatprep.subr.bf16.mxu0 0
        %1318 = vmatpush1.bf16.msra.mxu0 %v1309
        %1319 = vmatprep.subr.bf16.mxu0 0
        %1320 = vmatpush1.bf16.msra.mxu0 0
        %1321 = vmatprep.subr.bf16.mxu0 0
        %1322 = vmatpush1.bf16.msra.mxu0 0
        %1323 = vmatprep.subr.bf16.mxu0 0
        %1324 = vmatpush1.bf16.msra.mxu0 0
        %1325 = vmatprep.subr.bf16.mxu0 0
        %1326 = vmatpush1.bf16.msra.mxu0 0
        %1327 = vmatprep.subr.bf16.mxu0 0
        %1328 = vmatpush1.bf16.msra.mxu0 0
        %1329 = vmatprep.subr.bf16.mxu0 0
        %1330 = vmatpush1.bf16.msra.mxu0 0
        %1331 = vmatprep.subr.bf16.mxu0 0
        %1332 = vmatpush1.bf16.msra.mxu0 0
        %1333 = vmatprep.subr.bf16.mxu0 0
        %1334 = vmatpush1.bf16.msra.mxu0 0
        %1335 = vmatprep.subr.bf16.mxu0 0
        %1336 = vmatpush1.bf16.msra.mxu0 0
        %1337 = vmatprep.subr.bf16.mxu0 0
        %1338 = vmatpush1.bf16.msra.mxu0 0
        %1339 = vmatprep.subr.bf16.mxu0 0
        %1340 = vmatpush1.bf16.msra.mxu0 0
        %1341 = vmatprep.subr.bf16.mxu0 0
        %1342 = vmatpush1.bf16.msra.mxu0 0
        %1343 = vmatprep.subr.bf16.mxu0 0
        %1344 = vmatpush1.bf16.msra.mxu0 0
        %1345 = vmatprep.subr.bf16.mxu0 0
        %1346 = vmatpush1.bf16.msra.mxu0 0
        %1347 = vmatprep.mubr.bf16.mxu0 0
        %1348 = vmatmul.mubr.bf16.gmra.mrb[0].mxu0 %v1313
        %v1349 = vpop.f32.mrb[0].mxu0
        %v1350 = vadd.f32 %v1298, %v1349
        %v1351 = vpop.f32.mrb[0].mxu0
        %v1352 = vpop.f32.mrb[0].mxu0
        %v1353 = vpop.f32.mrb[0].mxu0
        %1354 = vdwg.mxu0
        %v1355 = vadd.f32 %v742, %v1350
        %v1356 = vsel %vm767, %v1355, 0.0
        %1357 = vadd.xlane.f32.xlu0 %v1356
        %v1358 = vpop.xlane.xlu0 %1357
        %v1359 = vrcp.pop 32.0
        %v1360 = vmul.f32 %v1358, %v1359
        %v1361 = vsub.f32 %v1355, %v1360
        %v1362 = vmul.f32 %v1361, %v1361
        %v1363 = vsel %vm767, %v1362, 0.0
        %1364 = vadd.xlane.f32.xlu0 %v1363
        %v1365 = vpop.xlane.xlu0 %1364
        %v1366 = vmul.f32 %v1365, %v1359
        %v1367 = vadd.f32 %v1366, 1e-05
        %v1368 = vrsqrt.pop %v1367
        %v1369 = vmul.f32 %v1361, %v1368
        %v1370 = vld [vmem:[%s708] sm:$0x1]
        %v1372 = vlaneseq
        %v1373 = vshrl.u32 %v1372, 7
        %v1374 = vsub.s32 0, %v1373
        %v1375 = vrot.slane %v1370, %v1374
        %v1377 = vmul.f32 %v1369, %v1375
        %v1378 = vld [vmem:[%s711] sm:$0x1]
        %v1380 = vlaneseq
        %v1381 = vshrl.u32 %v1380, 7
        %v1382 = vsub.s32 0, %v1381
        %v1383 = vrot.slane %v1378, %v1382
        %v1385 = vadd.f32 %v1377, %v1383
        %v1386 = vpack.c.bf16 %v1385, %v1385
        %v1387 = vld [vmem:[%s716] sm:$0xf]
        %v1388 = vld [vmem:[%s716 + $0x4] sm:$0xf]
        %v1389 = vld [vmem:[%s716 + $0x8] sm:$0xf]
        %v1390 = vld [vmem:[%s716 + $0xc] sm:$0xf]
        %v1391 = vld [vmem:[%s719] sm:$0x1]
        %v1393 = vlaneseq
        %v1394 = vshrl.u32 %v1393, 7
        %v1395 = vsub.s32 0, %v1394
        %v1396 = vrot.slane %v1391, %v1395
        %v1402 = vunpack.c.l.b16 %v1387
        %v1403 = vunpack.c.l.b16 %v1388
        %v1404 = vunpack.c.l.b16 %v1389
        %v1405 = vunpack.c.l.b16 %v1390
        %v1406 = vpack.c.b16 %v1403, %v1402
        %v1407 = vpack.c.b16 %v1405, %v1404
        %v1411 = vsel %vm767, %v1386, 0
        %1413 = vmatprep.subr.bf16.mxu0 0
        %1414 = vmatpush1.bf16.msra.mxu0 %v1406
        %1415 = vmatprep.subr.bf16.mxu0 0
        %1416 = vmatpush1.bf16.msra.mxu0 %v1407
        %1417 = vmatprep.subr.bf16.mxu0 0
        %1418 = vmatpush1.bf16.msra.mxu0 0
        %1419 = vmatprep.subr.bf16.mxu0 0
        %1420 = vmatpush1.bf16.msra.mxu0 0
        %1421 = vmatprep.subr.bf16.mxu0 0
        %1422 = vmatpush1.bf16.msra.mxu0 0
        %1423 = vmatprep.subr.bf16.mxu0 0
        %1424 = vmatpush1.bf16.msra.mxu0 0
        %1425 = vmatprep.subr.bf16.mxu0 0
        %1426 = vmatpush1.bf16.msra.mxu0 0
        %1427 = vmatprep.subr.bf16.mxu0 0
        %1428 = vmatpush1.bf16.msra.mxu0 0
        %1429 = vmatprep.subr.bf16.mxu0 0
        %1430 = vmatpush1.bf16.msra.mxu0 0
        %1431 = vmatprep.subr.bf16.mxu0 0
        %1432 = vmatpush1.bf16.msra.mxu0 0
        %1433 = vmatprep.subr.bf16.mxu0 0
        %1434 = vmatpush1.bf16.msra.mxu0 0
        %1435 = vmatprep.subr.bf16.mxu0 0
        %1436 = vmatpush1.bf16.msra.mxu0 0
        %1437 = vmatprep.subr.bf16.mxu0 0
        %1438 = vmatpush1.bf16.msra.mxu0 0
        %1439 = vmatprep.subr.bf16.mxu0 0
        %1440 = vmatpush1.bf16.msra.mxu0 0
        %1441 = vmatprep.subr.bf16.mxu0 0
        %1442 = vmatpush1.bf16.msra.mxu0 0
        %1443 = vmatprep.subr.bf16.mxu0 0
        %1444 = vmatpush1.bf16.msra.mxu0 0
        %1445 = vmatprep.mubr.bf16.mxu0 0
        %1446 = vmatmul.mubr.bf16.gmra.mrb[0].mxu0 %v1411
        %v1447 = vpop.f32.mrb[0].mxu0
        %v1448 = vadd.f32 %v1396, %v1447
        %v1449 = vpop.f32.mrb[0].mxu0
        %v1450 = vpop.f32.mrb[0].mxu0
        %v1451 = vpop.f32.mrb[0].mxu0
        %1452 = vdwg.mxu0
        %v1453 = vmax.f32 %v1448, 0.0
        %v1454 = vpack.c.bf16 %v1453, %v1453
        %v1455 = vld [vmem:[%s724] sm:$0xf]
        %v1456 = vld [vmem:[%s724 + $0x4] sm:$0xf]
        %v1457 = vld [vmem:[%s724 + $0x8] sm:$0xf]
        %v1458 = vld [vmem:[%s724 + $0xc] sm:$0xf]
        %v1459 = vld [vmem:[%s724 + $0x10] sm:$0xf]
        %v1460 = vld [vmem:[%s724 + $0x14] sm:$0xf]
        %v1461 = vld [vmem:[%s724 + $0x18] sm:$0xf]
        %v1462 = vld [vmem:[%s724 + $0x1c] sm:$0xf]
        %v1463 = vld [vmem:[%s727] sm:$0x1]
        %v1465 = vlaneseq
        %v1466 = vshrl.u32 %v1465, 7
        %v1467 = vsub.s32 0, %v1466
        %v1468 = vrot.slane %v1463, %v1467
        %v1478 = vunpack.c.l.b16 %v1455
        %v1479 = vunpack.c.l.b16 %v1456
        %v1480 = vunpack.c.l.b16 %v1457
        %v1481 = vunpack.c.l.b16 %v1458
        %v1482 = vunpack.c.l.b16 %v1459
        %v1483 = vunpack.c.l.b16 %v1460
        %v1484 = vunpack.c.l.b16 %v1461
        %v1485 = vunpack.c.l.b16 %v1462
        %v1486 = vpack.c.b16 %v1479, %v1478
        %v1487 = vpack.c.b16 %v1481, %v1480
        %v1488 = vpack.c.b16 %v1483, %v1482
        %v1489 = vpack.c.b16 %v1485, %v1484
        %vm1494 = vcmask 523264
        %v1496 = vsel %vm1494, %v1454, 0
        %1498 = vmatprep.subr.bf16.mxu0 0
        %1499 = vmatpush1.bf16.msra.mxu0 %v1486
        %1500 = vmatprep.subr.bf16.mxu0 0
        %1501 = vmatpush1.bf16.msra.mxu0 %v1487
        %1502 = vmatprep.subr.bf16.mxu0 0
        %1503 = vmatpush1.bf16.msra.mxu0 %v1488
        %1504 = vmatprep.subr.bf16.mxu0 0
        %1505 = vmatpush1.bf16.msra.mxu0 %v1489
        %1506 = vmatprep.subr.bf16.mxu0 0
        %1507 = vmatpush1.bf16.msra.mxu0 0
        %1508 = vmatprep.subr.bf16.mxu0 0
        %1509 = vmatpush1.bf16.msra.mxu0 0
        %1510 = vmatprep.subr.bf16.mxu0 0
        %1511 = vmatpush1.bf16.msra.mxu0 0
        %1512 = vmatprep.subr.bf16.mxu0 0
        %1513 = vmatpush1.bf16.msra.mxu0 0
        %1514 = vmatprep.subr.bf16.mxu0 0
        %1515 = vmatpush1.bf16.msra.mxu0 0
        %1516 = vmatprep.subr.bf16.mxu0 0
        %1517 = vmatpush1.bf16.msra.mxu0 0
        %1518 = vmatprep.subr.bf16.mxu0 0
        %1519 = vmatpush1.bf16.msra.mxu0 0
        %1520 = vmatprep.subr.bf16.mxu0 0
        %1521 = vmatpush1.bf16.msra.mxu0 0
        %1522 = vmatprep.subr.bf16.mxu0 0
        %1523 = vmatpush1.bf16.msra.mxu0 0
        %1524 = vmatprep.subr.bf16.mxu0 0
        %1525 = vmatpush1.bf16.msra.mxu0 0
        %1526 = vmatprep.subr.bf16.mxu0 0
        %1527 = vmatpush1.bf16.msra.mxu0 0
        %1528 = vmatprep.subr.bf16.mxu0 0
        %1529 = vmatpush1.bf16.msra.mxu0 0
        %1530 = vmatprep.mubr.bf16.mxu0 0
        %1531 = vmatmul.mubr.bf16.gmra.mrb[0].mxu0 %v1496
        %v1532 = vpop.f32.mrb[0].mxu0
        %v1533 = vadd.f32 %v1468, %v1532
        %v1534 = vpop.f32.mrb[0].mxu0
        %v1535 = vpop.f32.mrb[0].mxu0
        %v1536 = vpop.f32.mrb[0].mxu0
        %1537 = vdwg.mxu0
        %v1538 = vadd.f32 %v1385, %v1533
        %v1539 = vsel %vm767, %v1538, 0.0
        %1540 = vadd.xlane.f32.xlu0 %v1539
        %v1541 = vpop.xlane.xlu0 %1540
        %v1542 = vmul.f32 %v1541, %v1359
        %v1543 = vsub.f32 %v1538, %v1542
        %v1544 = vmul.f32 %v1543, %v1543
        %v1545 = vsel %vm767, %v1544, 0.0
        %1546 = vadd.xlane.f32.xlu0 %v1545
        %v1547 = vpop.xlane.xlu0 %1546
        %v1548 = vmul.f32 %v1547, %v1359
        %v1549 = vadd.f32 %v1548, 1e-05
        %v1550 = vrsqrt.pop %v1549
        %v1551 = vmul.f32 %v1543, %v1550
        %v1552 = vld [vmem:[%s730] sm:$0x1]
        %v1554 = vlaneseq
        %v1555 = vshrl.u32 %v1554, 7
        %v1556 = vsub.s32 0, %v1555
        %v1557 = vrot.slane %v1552, %v1556
        %v1559 = vmul.f32 %v1551, %v1557
        %v1560 = vld [vmem:[%s733] sm:$0x1]
        %v1562 = vlaneseq
        %v1563 = vshrl.u32 %v1562, 7
        %v1564 = vsub.s32 0, %v1563
        %v1565 = vrot.slane %v1560, %v1564
        %v1567 = vadd.f32 %v1559, %v1565
        %1568 = vst.msk [vmem:[#allocation2] sm:$0xff] %vm767, %v1567
        %p1569 = scmp.eq.s32.totalorder %s35, 1
        // Predicated region
        $region89: #{tpu_custom_call.1} parent=83 // pred_check
          %p1570 = pneg %p1569
        $region90: #{tpu_custom_call.1} parent=83 // pred_check_branch
          %1572 = sbr.rel (%p1570) target = $region92
        $region91: #{tpu_custom_call.1} parent=83 // pred_region
          %v1573 = vsel %vm767, %v1567, -inf
          %v1574 = vrot.slane %v1573, 4
          %v1575 = vmax.f32 %v1573, %v1574
          %v1576 = vrot.slane %v1575, 2
          %v1577 = vmax.f32 %v1575, %v1576
          %v1578 = vrot.slane %v1577, 1
          %v1579 = vmax.f32 %v1577, %v1578
          %v1580 = vld [vmem:[%s14] sm:$0xff]
          %v1581 = vld [vmem:[%s14 + $0x8] sm:$0xff]
          %v1582 = vld [vmem:[%s14 + $0x10] sm:$0xff]
          %v1583 = vld [vmem:[%s14 + $0x18] sm:$0xff]
          %v1584 = vld [vmem:[%s15] sm:$0x1]
          %v1586 = vsel %vm767, %v1579, 0
          %1588 = vmatprep.subr.mxu0 0.0
          %1589 = vmatpush1.msra.mxu0 %v1580
          %1590 = vmatprep.subr.mxu0 0.0
          %1591 = vmatpush1.msra.mxu0 %v1581
          %1592 = vmatprep.subr.mxu0 0.0
          %1593 = vmatpush1.msra.mxu0 %v1582
          %1594 = vmatprep.subr.mxu0 0.0
          %1595 = vmatpush1.msra.mxu0 %v1583
          %1596 = vmatprep.subr.mxu0 0.0
          %1597 = vmatpush1.msra.mxu0 0.0
          %1598 = vmatprep.subr.mxu0 0.0
          %1599 = vmatpush1.msra.mxu0 0.0
          %1600 = vmatprep.subr.mxu0 0.0
          %1601 = vmatpush1.msra.mxu0 0.0
          %1602 = vmatprep.subr.mxu0 0.0
          %1603 = vmatpush1.msra.mxu0 0.0
          %1604 = vmatprep.subr.mxu0 0.0
          %1605 = vmatpush1.msra.mxu0 0.0
          %1606 = vmatprep.subr.mxu0 0.0
          %1607 = vmatpush1.msra.mxu0 0.0
          %1608 = vmatprep.subr.mxu0 0.0
          %1609 = vmatpush1.msra.mxu0 0.0
          %1610 = vmatprep.subr.mxu0 0.0
          %1611 = vmatpush1.msra.mxu0 0.0
          %1612 = vmatprep.subr.mxu0 0.0
          %1613 = vmatpush1.msra.mxu0 0.0
          %1614 = vmatprep.subr.mxu0 0.0
          %1615 = vmatpush1.msra.mxu0 0.0
          %1616 = vmatprep.subr.mxu0 0.0
          %1617 = vmatpush1.msra.mxu0 0.0
          %1618 = vmatprep.subr.mxu0 0.0
          %1619 = vmatpush1.msra.mxu0 0.0
          %1620 = vmatprep.subr.mxu0 0.0
          %1621 = vmatpush1.msra.mxu0 0.0
          %1622 = vmatprep.subr.mxu0 0.0
          %1623 = vmatpush1.msra.mxu0 0.0
          %1624 = vmatprep.subr.mxu0 0.0
          %1625 = vmatpush1.msra.mxu0 0.0
          %1626 = vmatprep.subr.mxu0 0.0
          %1627 = vmatpush1.msra.mxu0 0.0
          %1628 = vmatprep.subr.mxu0 0.0
          %1629 = vmatpush1.msra.mxu0 0.0
          %1630 = vmatprep.subr.mxu0 0.0
          %1631 = vmatpush1.msra.mxu0 0.0
          %1632 = vmatprep.subr.mxu0 0.0
          %1633 = vmatpush1.msra.mxu0 0.0
          %1634 = vmatprep.subr.mxu0 0.0
          %1635 = vmatpush1.msra.mxu0 0.0
          %1636 = vmatprep.subr.mxu0 0.0
          %1637 = vmatpush1.msra.mxu0 0.0
          %1638 = vmatprep.subr.mxu0 0.0
          %1639 = vmatpush1.msra.mxu0 0.0
          %1640 = vmatprep.subr.mxu0 0.0
          %1641 = vmatpush1.msra.mxu0 0.0
          %1642 = vmatprep.subr.mxu0 0.0
          %1643 = vmatpush1.msra.mxu0 0.0
          %1644 = vmatprep.subr.mxu0 0.0
          %1645 = vmatpush1.msra.mxu0 0.0
          %1646 = vmatprep.subr.mxu0 0.0
          %1647 = vmatpush1.msra.mxu0 0.0
          %1648 = vmatprep.subr.mxu0 0.0
          %1649 = vmatpush1.msra.mxu0 0.0
          %1650 = vmatprep.subr.mxu0 0.0
          %1651 = vmatpush1.msra.mxu0 0.0
          %1652 = vmatprep.mubr.f32.mxu0 0.0
          %1653 = vmatmul.mubr.f32.gmra.mrb[0].mxu0 %v1586
          %v1654 = vpop.f32.mrb[0].mxu0
          %v1655 = vadd.f32 %v1584, %v1654
          %v1656 = vpop.f32.mrb[0].mxu0
          %1657 = vdwg.mxu0
          %vm1658 = vcmask 8192
          %v1659 = vsel %vm1658, %v1655, -inf
          %1660 = vmax.xlane.f32.xlu0 %v1659
          %v1661 = vpop.xlane.xlu0 %1660
          %v1662 = vsub.f32 %v1655, %v1661
          %v1663 = vmul.f32 %v1662, 1.442695
          %v1664 = vpow.pop %v1663
          %v1665 = vsel %vm1658, %v1664, 0.0
          %1666 = vadd.xlane.f32.xlu0 %v1665
          %v1667 = vpop.xlane.xlu0 %1666
          %v1668 = vrcp.pop %v1667
          %v1669 = vmul.f32 %v1664, %v1668
          %1670 = vst.msk [vmem:[%s682] sm:$0x1] %vm1658, %v1669
        $region92: #{tpu_custom_call.1} parent=83 // pred_fallthru
          _
        %s1671 = sand.u32 %s456, 1
        %s1672 = scalar_lea.sflag [#allocation5], %s1671
        %s1673 = sand.u32 %s456, 1
        %s1674 = scalar_lea.vmem [#allocation4], %s1673
        // Predicated region
        $region93: #{tpu_custom_call.1} parent=83 // pred_check
          %p1675 = pneg %p466
        $region94: #{tpu_custom_call.1} parent=83 // pred_check_branch
          %1677 = sbr.rel (%p1675) target = $region96
        $region95: #{tpu_custom_call.1} parent=83 // pred_region
          %s1679 = ssub.s32 16, 16
          %1680 = vsyncadd %s1672, %s1679
          %s1681 = smul.addr %s34, 16
          %s1682 = scalar_lea.hbm %s16, %s1681
          %s1684 = sshll.u32 %s1674, 4
          %s1685 = int_to_ptr.vmem [resolvable:$true] %s1684
          %1687 = dma.vmem_to_hbm [thread:$0]  %s1685, 16, %s1682, %s1672
        $region96: #{tpu_custom_call.1} parent=83 // pred_fallthru
          _
      $region84: #{tpu_custom_call.1} parent=5 // pred_fallthru
        _
      %p1688 = scmp.le.s32.totalorder 2, %s25
      // Predicated region
      $region97: #{tpu_custom_call.1} parent=5 // pred_check
        %p1689 = pneg %p1688
      $region98: #{tpu_custom_call.1} parent=5 // pred_check_branch
        %1691 = sbr.rel (%p1689) target = $region100
      $region99: #{tpu_custom_call.1} parent=5 // pred_region
        %s1692 = ssub.s32 %s25, 2
        // Predicated region
        $region101: #{tpu_custom_call.1} parent=99 // pred_check
          %p1693 = pneg %p472
        $region102: #{tpu_custom_call.1} parent=99 // pred_check_branch
          %1695 = sbr.rel (%p1693) target = $region104
        $region103: #{tpu_custom_call.1} parent=99 // pred_region
          %s1696 = sand.u32 %s457, 1
          %s1697 = scalar_lea.sflag [#allocation5], %s1696
          %s1698 = sand.u32 %s457, 1
          %s1699 = scalar_lea.vmem [#allocation4], %s1698
          %1700 = dma.done %s1697, 16
        $region104: #{tpu_custom_call.1} parent=99 // pred_fallthru
          _
      $region100: #{tpu_custom_call.1} parent=5 // pred_fallthru
        _
    $region6: #{tpu_custom_call.1} parent=1 // loop_footer
      %s29 = sadd.s32 1, %s25
    $region7: #{tpu_custom_call.1} parent=1 // loop_footer_branch
      %24 = sbr.rel target = $region3
    $region8: #{tpu_custom_call.1} parent=1 // loop_exit
      _
    %1701 = vsyncpa [#allocation5], 1
    %s1702 = scalar_lea.sflag [#allocation5], 1
    %1703 = vsyncpa %s1702, 1

</llo_original>
